<compile_context>
chip_gen: v7x
topology: tpu7x:2x2x1
jax: 0.10.0
libtpu: 0.0.40
codegen_flags: <defaults>
</compile_context>

<pallas_src>
import functools

import jax
import jax.numpy as jnp
from jax import lax
from jax.experimental import pallas as pl
from jax.experimental.pallas import tpu as pltpu

LANE = 128
_DEFAULT_LANE_CHUNK = 512     # lane chunk: h is (H, 512) ~= 16 vregs at H=32
_MXU_MIN_HIDDEN = 128         # use the MXU for hidden layers only when H >= this
_MAX_UNROLLED_LAYERS = 8      # static unroll threshold for hidden layers
_MAX_UNROLLED_CHUNKS = 4      # static unroll threshold for the lane-chunk loop


# ----------------------------- activations ---------------------------------

def _apply_act(x, act_fn_type):
    if act_fn_type == "relu":
        return jnp.maximum(x, 0.0)
    elif act_fn_type == "leaky_relu":
        # PyTorch default negative_slope = 0.01
        return jnp.where(x >= 0.0, x, 0.01 * x)
    elif act_fn_type == "ELU":
        # PyTorch default alpha = 1.0
        return jnp.where(x > 0.0, x, jnp.expm1(x))
    else:
        raise ValueError(f"unknown act_fn_type: {act_fn_type}")


def _apply_fin_act(x, fin_act_fn_type):
    if fin_act_fn_type == "softplus":
        # PyTorch Softplus: beta=1, threshold=20 (linear above threshold)
        return jnp.where(x > 20.0, x, jnp.log1p(jnp.exp(jnp.minimum(x, 20.0))))
    elif fin_act_fn_type == "identity":
        return x
    else:
        raise ValueError(f"unknown fin_act_fn_type: {fin_act_fn_type}")


# ------------------------------ Pallas kernel -------------------------------

def _mlp_kernel(xT_ref, wia_ref, wh_ref, bh_ref, wob_ref, o_ref, *,
                hidden_layer_num, act_fn_type, fin_act_fn_type, hidden_dim,
                lane_chunk):
    # xT_ref:  (3, TB)       batch tile, batch on lanes
    # wia_ref: (H, 4)        = [W_i^T | b_i]
    # wh_ref:  (L, H, H)     per-layer weights in (out, in) orientation
    # bh_ref:  (L, H, 1)
    # wob_ref: (H+1, 1)      = [w_o ; b_o]
    # o_ref:   (1, TB)
    H = hidden_dim
    L = hidden_layer_num
    tile = o_ref.shape[-1]
    chunk = min(lane_chunk, tile)
    nchunks = tile // chunk          # wrapper guarantees tile % chunk == 0

    wia = wia_ref[...]               # (H, 4)
    wob = wob_ref[...]               # (H+1, 1)
    wo = wob[0:H, :]                 # (H, 1)
    bo = wob[H:H + 1, :]             # (1, 1)

    def hidden_layer(w, b, h):
        # w: (H, H) (out, in);  b: (H, 1);  h: (H, chunk)
        if H < _MXU_MIN_HIDDEN:
            # Tiny H: broadcast-FMA on the VPU (same proven pattern as the
            # first layer).  Avoids f32 MXU multi-pass + result-FIFO drain and
            # keeps everything on otherwise-idle VALU slots.
            acc = w[:, 0:1] * h[0:1, :]
            for k in range(1, H):
                acc = acc + w[:, k:k + 1] * h[k:k + 1, :]
            acc = acc + b
        else:
            # Large H: lane-dense (H,H)@(H,chunk) on the MXU.  (Weight is the
            # LHS so the compiler can keep it stationary across lane groups.)
            acc = jnp.dot(w, h, preferred_element_type=jnp.float32) + b
        return _apply_act(acc, act_fn_type)

    def process(sl):
        # sl: lane slice (static `slice` or dynamic `pl.ds`) of width `chunk`
        xc = xT_ref[:, sl]                                   # (3, chunk)
        # First layer: K=3 contraction as three broadcast FMAs on the VPU.
        h = (wia[:, 0:1] * xc[0:1, :]
             + wia[:, 1:2] * xc[1:2, :]
             + wia[:, 2:3] * xc[2:3, :]
             + wia[:, 3:4])
        h = _apply_act(h, act_fn_type)

        if L <= _MAX_UNROLLED_LAYERS:
            for l in range(L):
                h = hidden_layer(wh_ref[l], bh_ref[l], h)
        else:
            # Large L: keep vreg pressure / I-stream flat (weights stay VMEM
            # resident; dynamic leading-dim index is cheap).
            def layer_body(l, hh):
                return hidden_layer(wh_ref[l], bh_ref[l], hh)
            h = lax.fori_loop(0, L, layer_body, h)

        # Output layer: N=1 -> VPU multiply + cross-sublane reduce; result vreg
        # fully populated, unmasked lane-dense store.
        out = jnp.sum(h * wo, axis=0, keepdims=True) + bo    # (1, chunk)
        o_ref[:, sl] = _apply_fin_act(out, fin_act_fn_type).astype(o_ref.dtype)

    if nchunks <= _MAX_UNROLLED_CHUNKS:
        # Static slices -> zero-cost ref views; chunks are independent so the
        # bounded unroll does not grow live ranges.
        for c in range(nchunks):
            process(slice(c * chunk, (c + 1) * chunk))
    else:
        def chunk_body(c, carry):
            off = pl.multiple_of(c * chunk, chunk)
            process(pl.ds(off, chunk))
            return carry
        lax.fori_loop(0, nchunks, chunk_body, 0)


# ------------------------------ wrapper --------------------------------------

def _round_up(x, m):
    return ((x + m - 1) // m) * m


def _choose_batch_tile(batch, max_tile, lane_chunk):
    """Aim for >= 8 grid steps (>= 4 per v7x TensorCore) so the BlockSpec
    pipeline can hide the x/out DMAs; keep the tile a multiple of the lane
    chunk so the in-kernel chunk loop covers it exactly."""
    b_ceil = _round_up(max(batch, 1), LANE)
    tile = (b_ceil // (8 * LANE)) * LANE
    tile = max(LANE, min(tile, max_tile))
    if tile > lane_chunk:
        tile = (tile // lane_chunk) * lane_chunk
    return tile


def mlp_forward(x, params, *, hidden_layer_num, act_fn_type, fin_act_fn_type,
                batch_tile=None, max_batch_tile=2048,
                lane_chunk=_DEFAULT_LANE_CHUNK):
    """MLP forward as one Pallas kernel, tiled over the (lane-mapped) batch."""
    wi, bi, wh, bh, wo, bo = params
    B, in_dim = x.shape
    assert in_dim == 3
    H = wi.shape[1]
    L = hidden_layer_num

    # ---- pack weights into the transposed (features-major) kernel layout ----
    wia = jnp.concatenate([wi.T, bi.reshape(H, 1)], axis=1)              # (H, 4)
    if L > 0:
        whT = jnp.transpose(wh, (0, 2, 1))                               # (L, H, H)
        bhT = bh.reshape(L, H, 1)                                        # (L, H, 1)
    else:
        whT = jnp.zeros((1, H, H), jnp.float32)
        bhT = jnp.zeros((1, H, 1), jnp.float32)
    Lb = max(L, 1)
    wob = jnp.concatenate([wo.reshape(H, 1), bo.reshape(1, 1)], axis=0)  # (H+1, 1)

    # ---- tile selection ------------------------------------------------------
    if batch_tile is None:
        batch_tile = _choose_batch_tile(B, max_batch_tile, lane_chunk)
    assert batch_tile % LANE == 0
    assert batch_tile <= lane_chunk or batch_tile % lane_chunk == 0
    b_pad = _round_up(B, batch_tile)
    grid = (b_pad // batch_tile,)

    # ---- input: single transposed view; pad fuses into the same copy --------
    # (No zeros + dynamic-update-slice, no extra HBM pass; when B is already a
    # tile multiple there is no padding at all.)
    xT = x.T                                                             # (3, B)
    if b_pad != B:
        xT = jnp.pad(xT, ((0, 0), (0, b_pad - B)))

    kernel = functools.partial(
        _mlp_kernel,
        hidden_layer_num=L,
        act_fn_type=act_fn_type,
        fin_act_fn_type=fin_act_fn_type,
        hidden_dim=H,
        lane_chunk=lane_chunk,
    )

    # ---- VMEM budget (weights are double-buffered by the pipeline even with a
    # constant index_map) and a cost estimate for XLA's scheduler -------------
    weight_bytes = 4 * int(wia.size + whT.size + bhT.size + wob.size)
    io_tile_bytes = 4 * (3 * batch_tile + batch_tile)
    vmem_budget = 2 * weight_bytes + 2 * io_tile_bytes + (8 << 20)
    vmem_budget = int(min(64 << 20, max(32 << 20, vmem_budget)))

    flops = 2 * B * (3 * H + L * H * H + H)
    transcendentals = (B * H * (L + 1) if act_fn_type == "ELU" else 0) \
        + (B if fin_act_fn_type == "softplus" else 0)
    bytes_accessed = 4 * (int(x.size) + B) + weight_bytes

    outT = pl.pallas_call(
        kernel,
        out_shape=jax.ShapeDtypeStruct((1, b_pad), jnp.float32),
        grid_spec=pltpu.PrefetchScalarGridSpec(
            num_scalar_prefetch=0,
            grid=grid,
            in_specs=[
                pl.BlockSpec((3, batch_tile), lambda i: (0, i)),    # x^T tile
                pl.BlockSpec((H, 4), lambda i: (0, 0)),             # [Wi^T | bi]
                pl.BlockSpec((Lb, H, H), lambda i: (0, 0, 0)),      # hidden W
                pl.BlockSpec((Lb, H, 1), lambda i: (0, 0, 0)),      # hidden b
                pl.BlockSpec((H + 1, 1), lambda i: (0, 0)),         # [wo ; bo]
            ],
            out_specs=pl.BlockSpec((1, batch_tile), lambda i: (0, i)),
        ),
        compiler_params=pltpu.CompilerParams(
            dimension_semantics=("parallel",),
            vmem_limit_bytes=vmem_budget),
        cost_estimate=pl.CostEstimate(
            flops=int(flops),
            transcendentals=int(transcendentals),
            bytes_accessed=int(bytes_accessed)),
    )(xT, wia, whT, bhT, wob)

    if b_pad != B:
        outT = outT[:, :B]
    # (1, B) -> (B, 1) is a pure reshape (same memory order).
    return outT.reshape(B, 1)


# ------------------------- deterministic parameter init ---------------------

def init_params(key, node_num_per_layer, hidden_layer_num):
    """Mimic nn.Linear default init: U(-1/sqrt(fan_in), 1/sqrt(fan_in))."""
    H, L = node_num_per_layer, hidden_layer_num
    keys = jax.random.split(key, 6)

    def uniform(k, shape, fan_in):
        bound = 1.0 / jnp.sqrt(float(fan_in))
        return jax.random.uniform(k, shape, jnp.float32, -bound, bound)

    wi = uniform(keys[0], (3, H), 3)              # (in, out) layout
    bi = uniform(keys[1], (1, H), 3)
    wh = uniform(keys[2], (L, H, H), H)           # (in, out) per layer
    bh = uniform(keys[3], (L, 1, H), H)
    wo = uniform(keys[4], (H, 1), H)
    bo = uniform(keys[5], (1, 1), H)
    return wi, bi, wh, bh, wo, bo


# ------------------------------ pure-JAX reference ---------------------------

def mlp_reference(x, params, *, hidden_layer_num, act_fn_type, fin_act_fn_type):
    wi, bi, wh, bh, wo, bo = params
    h = _apply_act(x @ wi + bi, act_fn_type)
    for l in range(hidden_layer_num):
        h = _apply_act(h @ wh[l] + bh[l], act_fn_type)
    return _apply_fin_act(h @ wo + bo, fin_act_fn_type)


# ---------------------------------- main ------------------------------------

if __name__ == "__main__":
    key = jax.random.PRNGKey(0)

    configs = [
        # non-multiple batch exercises the (fused) pad/slice path; 3 grid steps
        dict(node_num_per_layer=32, hidden_layer_num=2,
             act_fn_type="relu", fin_act_fn_type="softplus", batch=333),
        # multiple-of-128 batch: no padding at all, 8 grid steps (tile=128)
        dict(node_num_per_layer=32, hidden_layer_num=2,
             act_fn_type="ELU", fin_act_fn_type="identity", batch=1024),
    ]

    for cfg in configs:
        key, kp, kx = jax.random.split(key, 3)
        params = init_params(kp, cfg["node_num_per_layer"],
                             cfg["hidden_layer_num"])
        x = jax.random.normal(kx, (cfg["batch"], 3), dtype=jnp.float32)

        out = mlp_forward(
            x, params,
            hidden_layer_num=cfg["hidden_layer_num"],
            act_fn_type=cfg["act_fn_type"],
            fin_act_fn_type=cfg["fin_act_fn_type"],
        )
        out = jax.block_until_ready(out)

        ref = mlp_reference(
            x, params,
            hidden_layer_num=cfg["hidden_layer_num"],
            act_fn_type=cfg["act_fn_type"],
            fin_act_fn_type=cfg["fin_act_fn_type"],
        )
        assert out.shape == (cfg["batch"], 1), out.shape
        assert jnp.allclose(out, ref, atol=1e-4, rtol=1e-4), \
            f"mismatch vs reference for config {cfg}"

    print("KERNEL_OK")
</pallas_src>

<mosaic_0001>
module attributes {stable_mosaic.version = 11 : i64} {
  func.func @_mlp_kernel(%arg0: i32, %arg1: memref<3x128xf32, #tpu.memory_space<vmem>>, %arg2: memref<32x4xf32, #tpu.memory_space<vmem>>, %arg3: memref<2x32x32xf32, #tpu.memory_space<vmem>>, %arg4: memref<2x32x1xf32, #tpu.memory_space<vmem>>, %arg5: memref<33x1xf32, #tpu.memory_space<vmem>>, %arg6: memref<1x128xf32, #tpu.memory_space<vmem>>) attributes {dimension_semantics = [#tpu.dimension_semantics<parallel>], iteration_bounds = array<i64: 3>, scalar_prefetch = 0 : i64, scratch_operands = 0 : i64, tpu.core_type = #tpu.core_type<tc>, window_params = [{transform_indices = @transform_0, window_bounds = array<i64: 3, 128>}, {pipeline_mode = #tpu.pipeline_mode<synchronous>, transform_indices = @transform_1, window_bounds = array<i64: 32, 4>}, {pipeline_mode = #tpu.pipeline_mode<synchronous>, transform_indices = @transform_2, window_bounds = array<i64: 2, 32, 32>}, {pipeline_mode = #tpu.pipeline_mode<synchronous>, transform_indices = @transform_3, window_bounds = array<i64: 2, 32, 1>}, {pipeline_mode = #tpu.pipeline_mode<synchronous>, transform_indices = @transform_4, window_bounds = array<i64: 33, 1>}, {transform_indices = @transform_5, window_bounds = array<i64: 1, 128>}]} {
    %c0 = arith.constant 0 : index
    %c0_0 = arith.constant 0 : index
    %0 = vector.load %arg2[%c0, %c0_0] : memref<32x4xf32, #tpu.memory_space<vmem>>, vector<32x4xf32>
    %c0_1 = arith.constant 0 : index
    %c0_2 = arith.constant 0 : index
    %1 = vector.load %arg5[%c0_1, %c0_2] : memref<33x1xf32, #tpu.memory_space<vmem>>, vector<33x1xf32>
    %2 = vector.extract_strided_slice %1 {offsets = [0, 0], sizes = [32, 1], strides = [1, 1]} : vector<33x1xf32> to vector<32x1xf32>
    %3 = vector.extract_strided_slice %1 {offsets = [32, 0], sizes = [1, 1], strides = [1, 1]} : vector<33x1xf32> to vector<1x1xf32>
    %c0_3 = arith.constant 0 : index
    %c0_4 = arith.constant 0 : index
    %4 = vector.load %arg1[%c0_3, %c0_4] : memref<3x128xf32, #tpu.memory_space<vmem>>, vector<3x128xf32>
    %5 = vector.extract_strided_slice %0 {offsets = [0, 0], sizes = [32, 1], strides = [1, 1]} : vector<32x4xf32> to vector<32x1xf32>
    %6 = vector.extract_strided_slice %4 {offsets = [0, 0], sizes = [1, 128], strides = [1, 1]} : vector<3x128xf32> to vector<1x128xf32>
    %7 = vector.broadcast %5 : vector<32x1xf32> to vector<32x128xf32>
    %8 = vector.broadcast %6 : vector<1x128xf32> to vector<32x128xf32>
    %9 = arith.mulf %7, %8 : vector<32x128xf32>
    %10 = vector.extract_strided_slice %0 {offsets = [0, 1], sizes = [32, 1], strides = [1, 1]} : vector<32x4xf32> to vector<32x1xf32>
    %11 = vector.extract_strided_slice %4 {offsets = [1, 0], sizes = [1, 128], strides = [1, 1]} : vector<3x128xf32> to vector<1x128xf32>
    %12 = vector.broadcast %10 : vector<32x1xf32> to vector<32x128xf32>
    %13 = vector.broadcast %11 : vector<1x128xf32> to vector<32x128xf32>
    %14 = arith.mulf %12, %13 : vector<32x128xf32>
    %15 = arith.addf %9, %14 : vector<32x128xf32>
    %16 = vector.extract_strided_slice %0 {offsets = [0, 2], sizes = [32, 1], strides = [1, 1]} : vector<32x4xf32> to vector<32x1xf32>
    %17 = vector.extract_strided_slice %4 {offsets = [2, 0], sizes = [1, 128], strides = [1, 1]} : vector<3x128xf32> to vector<1x128xf32>
    %18 = vector.broadcast %16 : vector<32x1xf32> to vector<32x128xf32>
    %19 = vector.broadcast %17 : vector<1x128xf32> to vector<32x128xf32>
    %20 = arith.mulf %18, %19 : vector<32x128xf32>
    %21 = arith.addf %15, %20 : vector<32x128xf32>
    %22 = vector.extract_strided_slice %0 {offsets = [0, 3], sizes = [32, 1], strides = [1, 1]} : vector<32x4xf32> to vector<32x1xf32>
    %23 = vector.broadcast %22 : vector<32x1xf32> to vector<32x128xf32>
    %24 = arith.addf %21, %23 : vector<32x128xf32>
    %cst = arith.constant 0.000000e+00 : f32
    %25 = vector.broadcast %cst : f32 to vector<32x128xf32>
    %26 = arith.maximumf %24, %25 : vector<32x128xf32>
    %c0_5 = arith.constant 0 : index
    %c0_6 = arith.constant 0 : index
    %c0_7 = arith.constant 0 : index
    %27 = vector.load %arg3[%c0_5, %c0_6, %c0_7] : memref<2x32x32xf32, #tpu.memory_space<vmem>>, vector<1x32x32xf32>
    %28 = vector.shape_cast %27 : vector<1x32x32xf32> to vector<32x32xf32>
    %c0_8 = arith.constant 0 : index
    %c0_9 = arith.constant 0 : index
    %c0_10 = arith.constant 0 : index
    %29 = vector.load %arg4[%c0_8, %c0_9, %c0_10] : memref<2x32x1xf32, #tpu.memory_space<vmem>>, vector<1x32x1xf32>
    %30 = vector.shape_cast %29 : vector<1x32x1xf32> to vector<32x1xf32>
    %31 = vector.extract_strided_slice %28 {offsets = [0, 0], sizes = [32, 1], strides = [1, 1]} : vector<32x32xf32> to vector<32x1xf32>
    %32 = vector.extract_strided_slice %26 {offsets = [0, 0], sizes = [1, 128], strides = [1, 1]} : vector<32x128xf32> to vector<1x128xf32>
    %33 = vector.broadcast %31 : vector<32x1xf32> to vector<32x128xf32>
    %34 = vector.broadcast %32 : vector<1x128xf32> to vector<32x128xf32>
    %35 = arith.mulf %33, %34 : vector<32x128xf32>
    %36 = vector.extract_strided_slice %28 {offsets = [0, 1], sizes = [32, 1], strides = [1, 1]} : vector<32x32xf32> to vector<32x1xf32>
    %37 = vector.extract_strided_slice %26 {offsets = [1, 0], sizes = [1, 128], strides = [1, 1]} : vector<32x128xf32> to vector<1x128xf32>
    %38 = vector.broadcast %36 : vector<32x1xf32> to vector<32x128xf32>
    %39 = vector.broadcast %37 : vector<1x128xf32> to vector<32x128xf32>
    %40 = arith.mulf %38, %39 : vector<32x128xf32>
    %41 = arith.addf %35, %40 : vector<32x128xf32>
    %42 = vector.extract_strided_slice %28 {offsets = [0, 2], sizes = [32, 1], strides = [1, 1]} : vector<32x32xf32> to vector<32x1xf32>
    %43 = vector.extract_strided_slice %26 {offsets = [2, 0], sizes = [1, 128], strides = [1, 1]} : vector<32x128xf32> to vector<1x128xf32>
    %44 = vector.broadcast %42 : vector<32x1xf32> to vector<32x128xf32>
    %45 = vector.broadcast %43 : vector<1x128xf32> to vector<32x128xf32>
    %46 = arith.mulf %44, %45 : vector<32x128xf32>
    %47 = arith.addf %41, %46 : vector<32x128xf32>
    %48 = vector.extract_strided_slice %28 {offsets = [0, 3], sizes = [32, 1], strides = [1, 1]} : vector<32x32xf32> to vector<32x1xf32>
    %49 = vector.extract_strided_slice %26 {offsets = [3, 0], sizes = [1, 128], strides = [1, 1]} : vector<32x128xf32> to vector<1x128xf32>
    %50 = vector.broadcast %48 : vector<32x1xf32> to vector<32x128xf32>
    %51 = vector.broadcast %49 : vector<1x128xf32> to vector<32x128xf32>
    %52 = arith.mulf %50, %51 : vector<32x128xf32>
    %53 = arith.addf %47, %52 : vector<32x128xf32>
    %54 = vector.extract_strided_slice %28 {offsets = [0, 4], sizes = [32, 1], strides = [1, 1]} : vector<32x32xf32> to vector<32x1xf32>
    %55 = vector.extract_strided_slice %26 {offsets = [4, 0], sizes = [1, 128], strides = [1, 1]} : vector<32x128xf32> to vector<1x128xf32>
    %56 = vector.broadcast %54 : vector<32x1xf32> to vector<32x128xf32>
    %57 = vector.broadcast %55 : vector<1x128xf32> to vector<32x128xf32>
    %58 = arith.mulf %56, %57 : vector<32x128xf32>
    %59 = arith.addf %53, %58 : vector<32x128xf32>
    %60 = vector.extract_strided_slice %28 {offsets = [0, 5], sizes = [32, 1], strides = [1, 1]} : vector<32x32xf32> to vector<32x1xf32>
    %61 = vector.extract_strided_slice %26 {offsets = [5, 0], sizes = [1, 128], strides = [1, 1]} : vector<32x128xf32> to vector<1x128xf32>
    %62 = vector.broadcast %60 : vector<32x1xf32> to vector<32x128xf32>
    %63 = vector.broadcast %61 : vector<1x128xf32> to vector<32x128xf32>
    %64 = arith.mulf %62, %63 : vector<32x128xf32>
    %65 = arith.addf %59, %64 : vector<32x128xf32>
    %66 = vector.extract_strided_slice %28 {offsets = [0, 6], sizes = [32, 1], strides = [1, 1]} : vector<32x32xf32> to vector<32x1xf32>
    %67 = vector.extract_strided_slice %26 {offsets = [6, 0], sizes = [1, 128], strides = [1, 1]} : vector<32x128xf32> to vector<1x128xf32>
    %68 = vector.broadcast %66 : vector<32x1xf32> to vector<32x128xf32>
    %69 = vector.broadcast %67 : vector<1x128xf32> to vector<32x128xf32>
    %70 = arith.mulf %68, %69 : vector<32x128xf32>
    %71 = arith.addf %65, %70 : vector<32x128xf32>
    %72 = vector.extract_strided_slice %28 {offsets = [0, 7], sizes = [32, 1], strides = [1, 1]} : vector<32x32xf32> to vector<32x1xf32>
    %73 = vector.extract_strided_slice %26 {offsets = [7, 0], sizes = [1, 128], strides = [1, 1]} : vector<32x128xf32> to vector<1x128xf32>
    %74 = vector.broadcast %72 : vector<32x1xf32> to vector<32x128xf32>
    %75 = vector.broadcast %73 : vector<1x128xf32> to vector<32x128xf32>
    %76 = arith.mulf %74, %75 : vector<32x128xf32>
    %77 = arith.addf %71, %76 : vector<32x128xf32>
    %78 = vector.extract_strided_slice %28 {offsets = [0, 8], sizes = [32, 1], strides = [1, 1]} : vector<32x32xf32> to vector<32x1xf32>
    %79 = vector.extract_strided_slice %26 {offsets = [8, 0], sizes = [1, 128], strides = [1, 1]} : vector<32x128xf32> to vector<1x128xf32>
    %80 = vector.broadcast %78 : vector<32x1xf32> to vector<32x128xf32>
    %81 = vector.broadcast %79 : vector<1x128xf32> to vector<32x128xf32>
    %82 = arith.mulf %80, %81 : vector<32x128xf32>
    %83 = arith.addf %77, %82 : vector<32x128xf32>
    %84 = vector.extract_strided_slice %28 {offsets = [0, 9], sizes = [32, 1], strides = [1, 1]} : vector<32x32xf32> to vector<32x1xf32>
    %85 = vector.extract_strided_slice %26 {offsets = [9, 0], sizes = [1, 128], strides = [1, 1]} : vector<32x128xf32> to vector<1x128xf32>
    %86 = vector.broadcast %84 : vector<32x1xf32> to vector<32x128xf32>
    %87 = vector.broadcast %85 : vector<1x128xf32> to vector<32x128xf32>
    %88 = arith.mulf %86, %87 : vector<32x128xf32>
    %89 = arith.addf %83, %88 : vector<32x128xf32>
    %90 = vector.extract_strided_slice %28 {offsets = [0, 10], sizes = [32, 1], strides = [1, 1]} : vector<32x32xf32> to vector<32x1xf32>
    %91 = vector.extract_strided_slice %26 {offsets = [10, 0], sizes = [1, 128], strides = [1, 1]} : vector<32x128xf32> to vector<1x128xf32>
    %92 = vector.broadcast %90 : vector<32x1xf32> to vector<32x128xf32>
    %93 = vector.broadcast %91 : vector<1x128xf32> to vector<32x128xf32>
    %94 = arith.mulf %92, %93 : vector<32x128xf32>
    %95 = arith.addf %89, %94 : vector<32x128xf32>
    %96 = vector.extract_strided_slice %28 {offsets = [0, 11], sizes = [32, 1], strides = [1, 1]} : vector<32x32xf32> to vector<32x1xf32>
    %97 = vector.extract_strided_slice %26 {offsets = [11, 0], sizes = [1, 128], strides = [1, 1]} : vector<32x128xf32> to vector<1x128xf32>
    %98 = vector.broadcast %96 : vector<32x1xf32> to vector<32x128xf32>
    %99 = vector.broadcast %97 : vector<1x128xf32> to vector<32x128xf32>
    %100 = arith.mulf %98, %99 : vector<32x128xf32>
    %101 = arith.addf %95, %100 : vector<32x128xf32>
    %102 = vector.extract_strided_slice %28 {offsets = [0, 12], sizes = [32, 1], strides = [1, 1]} : vector<32x32xf32> to vector<32x1xf32>
    %103 = vector.extract_strided_slice %26 {offsets = [12, 0], sizes = [1, 128], strides = [1, 1]} : vector<32x128xf32> to vector<1x128xf32>
    %104 = vector.broadcast %102 : vector<32x1xf32> to vector<32x128xf32>
    %105 = vector.broadcast %103 : vector<1x128xf32> to vector<32x128xf32>
    %106 = arith.mulf %104, %105 : vector<32x128xf32>
    %107 = arith.addf %101, %106 : vector<32x128xf32>
    %108 = vector.extract_strided_slice %28 {offsets = [0, 13], sizes = [32, 1], strides = [1, 1]} : vector<32x32xf32> to vector<32x1xf32>
    %109 = vector.extract_strided_slice %26 {offsets = [13, 0], sizes = [1, 128], strides = [1, 1]} : vector<32x128xf32> to vector<1x128xf32>
    %110 = vector.broadcast %108 : vector<32x1xf32> to vector<32x128xf32>
    %111 = vector.broadcast %109 : vector<1x128xf32> to vector<32x128xf32>
    %112 = arith.mulf %110, %111 : vector<32x128xf32>
    %113 = arith.addf %107, %112 : vector<32x128xf32>
    %114 = vector.extract_strided_slice %28 {offsets = [0, 14], sizes = [32, 1], strides = [1, 1]} : vector<32x32xf32> to vector<32x1xf32>
    %115 = vector.extract_strided_slice %26 {offsets = [14, 0], sizes = [1, 128], strides = [1, 1]} : vector<32x128xf32> to vector<1x128xf32>
    %116 = vector.broadcast %114 : vector<32x1xf32> to vector<32x128xf32>
    %117 = vector.broadcast %115 : vector<1x128xf32> to vector<32x128xf32>
    %118 = arith.mulf %116, %117 : vector<32x128xf32>
    %119 = arith.addf %113, %118 : vector<32x128xf32>
    %120 = vector.extract_strided_slice %28 {offsets = [0, 15], sizes = [32, 1], strides = [1, 1]} : vector<32x32xf32> to vector<32x1xf32>
    %121 = vector.extract_strided_slice %26 {offsets = [15, 0], sizes = [1, 128], strides = [1, 1]} : vector<32x128xf32> to vector<1x128xf32>
    %122 = vector.broadcast %120 : vector<32x1xf32> to vector<32x128xf32>
    %123 = vector.broadcast %121 : vector<1x128xf32> to vector<32x128xf32>
    %124 = arith.mulf %122, %123 : vector<32x128xf32>
    %125 = arith.addf %119, %124 : vector<32x128xf32>
    %126 = vector.extract_strided_slice %28 {offsets = [0, 16], sizes = [32, 1], strides = [1, 1]} : vector<32x32xf32> to vector<32x1xf32>
    %127 = vector.extract_strided_slice %26 {offsets = [16, 0], sizes = [1, 128], strides = [1, 1]} : vector<32x128xf32> to vector<1x128xf32>
    %128 = vector.broadcast %126 : vector<32x1xf32> to vector<32x128xf32>
    %129 = vector.broadcast %127 : vector<1x128xf32> to vector<32x128xf32>
    %130 = arith.mulf %128, %129 : vector<32x128xf32>
    %131 = arith.addf %125, %130 : vector<32x128xf32>
    %132 = vector.extract_strided_slice %28 {offsets = [0, 17], sizes = [32, 1], strides = [1, 1]} : vector<32x32xf32> to vector<32x1xf32>
    %133 = vector.extract_strided_slice %26 {offsets = [17, 0], sizes = [1, 128], strides = [1, 1]} : vector<32x128xf32> to vector<1x128xf32>
    %134 = vector.broadcast %132 : vector<32x1xf32> to vector<32x128xf32>
    %135 = vector.broadcast %133 : vector<1x128xf32> to vector<32x128xf32>
    %136 = arith.mulf %134, %135 : vector<32x128xf32>
    %137 = arith.addf %131, %136 : vector<32x128xf32>
    %138 = vector.extract_strided_slice %28 {offsets = [0, 18], sizes = [32, 1], strides = [1, 1]} : vector<32x32xf32> to vector<32x1xf32>
    %139 = vector.extract_strided_slice %26 {offsets = [18, 0], sizes = [1, 128], strides = [1, 1]} : vector<32x128xf32> to vector<1x128xf32>
    %140 = vector.broadcast %138 : vector<32x1xf32> to vector<32x128xf32>
    %141 = vector.broadcast %139 : vector<1x128xf32> to vector<32x128xf32>
    %142 = arith.mulf %140, %141 : vector<32x128xf32>
    %143 = arith.addf %137, %142 : vector<32x128xf32>
    %144 = vector.extract_strided_slice %28 {offsets = [0, 19], sizes = [32, 1], strides = [1, 1]} : vector<32x32xf32> to vector<32x1xf32>
    %145 = vector.extract_strided_slice %26 {offsets = [19, 0], sizes = [1, 128], strides = [1, 1]} : vector<32x128xf32> to vector<1x128xf32>
    %146 = vector.broadcast %144 : vector<32x1xf32> to vector<32x128xf32>
    %147 = vector.broadcast %145 : vector<1x128xf32> to vector<32x128xf32>
    %148 = arith.mulf %146, %147 : vector<32x128xf32>
    %149 = arith.addf %143, %148 : vector<32x128xf32>
    %150 = vector.extract_strided_slice %28 {offsets = [0, 20], sizes = [32, 1], strides = [1, 1]} : vector<32x32xf32> to vector<32x1xf32>
    %151 = vector.extract_strided_slice %26 {offsets = [20, 0], sizes = [1, 128], strides = [1, 1]} : vector<32x128xf32> to vector<1x128xf32>
    %152 = vector.broadcast %150 : vector<32x1xf32> to vector<32x128xf32>
    %153 = vector.broadcast %151 : vector<1x128xf32> to vector<32x128xf32>
    %154 = arith.mulf %152, %153 : vector<32x128xf32>
    %155 = arith.addf %149, %154 : vector<32x128xf32>
    %156 = vector.extract_strided_slice %28 {offsets = [0, 21], sizes = [32, 1], strides = [1, 1]} : vector<32x32xf32> to vector<32x1xf32>
    %157 = vector.extract_strided_slice %26 {offsets = [21, 0], sizes = [1, 128], strides = [1, 1]} : vector<32x128xf32> to vector<1x128xf32>
    %158 = vector.broadcast %156 : vector<32x1xf32> to vector<32x128xf32>
    %159 = vector.broadcast %157 : vector<1x128xf32> to vector<32x128xf32>
    %160 = arith.mulf %158, %159 : vector<32x128xf32>
    %161 = arith.addf %155, %160 : vector<32x128xf32>
    %162 = vector.extract_strided_slice %28 {offsets = [0, 22], sizes = [32, 1], strides = [1, 1]} : vector<32x32xf32> to vector<32x1xf32>
    %163 = vector.extract_strided_slice %26 {offsets = [22, 0], sizes = [1, 128], strides = [1, 1]} : vector<32x128xf32> to vector<1x128xf32>
    %164 = vector.broadcast %162 : vector<32x1xf32> to vector<32x128xf32>
    %165 = vector.broadcast %163 : vector<1x128xf32> to vector<32x128xf32>
    %166 = arith.mulf %164, %165 : vector<32x128xf32>
    %167 = arith.addf %161, %166 : vector<32x128xf32>
    %168 = vector.extract_strided_slice %28 {offsets = [0, 23], sizes = [32, 1], strides = [1, 1]} : vector<32x32xf32> to vector<32x1xf32>
    %169 = vector.extract_strided_slice %26 {offsets = [23, 0], sizes = [1, 128], strides = [1, 1]} : vector<32x128xf32> to vector<1x128xf32>
    %170 = vector.broadcast %168 : vector<32x1xf32> to vector<32x128xf32>
    %171 = vector.broadcast %169 : vector<1x128xf32> to vector<32x128xf32>
    %172 = arith.mulf %170, %171 : vector<32x128xf32>
    %173 = arith.addf %167, %172 : vector<32x128xf32>
    %174 = vector.extract_strided_slice %28 {offsets = [0, 24], sizes = [32, 1], strides = [1, 1]} : vector<32x32xf32> to vector<32x1xf32>
    %175 = vector.extract_strided_slice %26 {offsets = [24, 0], sizes = [1, 128], strides = [1, 1]} : vector<32x128xf32> to vector<1x128xf32>
    %176 = vector.broadcast %174 : vector<32x1xf32> to vector<32x128xf32>
    %177 = vector.broadcast %175 : vector<1x128xf32> to vector<32x128xf32>
    %178 = arith.mulf %176, %177 : vector<32x128xf32>
    %179 = arith.addf %173, %178 : vector<32x128xf32>
    %180 = vector.extract_strided_slice %28 {offsets = [0, 25], sizes = [32, 1], strides = [1, 1]} : vector<32x32xf32> to vector<32x1xf32>
    %181 = vector.extract_strided_slice %26 {offsets = [25, 0], sizes = [1, 128], strides = [1, 1]} : vector<32x128xf32> to vector<1x128xf32>
    %182 = vector.broadcast %180 : vector<32x1xf32> to vector<32x128xf32>
    %183 = vector.broadcast %181 : vector<1x128xf32> to vector<32x128xf32>
    %184 = arith.mulf %182, %183 : vector<32x128xf32>
    %185 = arith.addf %179, %184 : vector<32x128xf32>
    %186 = vector.extract_strided_slice %28 {offsets = [0, 26], sizes = [32, 1], strides = [1, 1]} : vector<32x32xf32> to vector<32x1xf32>
    %187 = vector.extract_strided_slice %26 {offsets = [26, 0], sizes = [1, 128], strides = [1, 1]} : vector<32x128xf32> to vector<1x128xf32>
    %188 = vector.broadcast %186 : vector<32x1xf32> to vector<32x128xf32>
    %189 = vector.broadcast %187 : vector<1x128xf32> to vector<32x128xf32>
    %190 = arith.mulf %188, %189 : vector<32x128xf32>
    %191 = arith.addf %185, %190 : vector<32x128xf32>
    %192 = vector.extract_strided_slice %28 {offsets = [0, 27], sizes = [32, 1], strides = [1, 1]} : vector<32x32xf32> to vector<32x1xf32>
    %193 = vector.extract_strided_slice %26 {offsets = [27, 0], sizes = [1, 128], strides = [1, 1]} : vector<32x128xf32> to vector<1x128xf32>
    %194 = vector.broadcast %192 : vector<32x1xf32> to vector<32x128xf32>
    %195 = vector.broadcast %193 : vector<1x128xf32> to vector<32x128xf32>
    %196 = arith.mulf %194, %195 : vector<32x128xf32>
    %197 = arith.addf %191, %196 : vector<32x128xf32>
    %198 = vector.extract_strided_slice %28 {offsets = [0, 28], sizes = [32, 1], strides = [1, 1]} : vector<32x32xf32> to vector<32x1xf32>
    %199 = vector.extract_strided_slice %26 {offsets = [28, 0], sizes = [1, 128], strides = [1, 1]} : vector<32x128xf32> to vector<1x128xf32>
    %200 = vector.broadcast %198 : vector<32x1xf32> to vector<32x128xf32>
    %201 = vector.broadcast %199 : vector<1x128xf32> to vector<32x128xf32>
    %202 = arith.mulf %200, %201 : vector<32x128xf32>
    %203 = arith.addf %197, %202 : vector<32x128xf32>
    %204 = vector.extract_strided_slice %28 {offsets = [0, 29], sizes = [32, 1], strides = [1, 1]} : vector<32x32xf32> to vector<32x1xf32>
    %205 = vector.extract_strided_slice %26 {offsets = [29, 0], sizes = [1, 128], strides = [1, 1]} : vector<32x128xf32> to vector<1x128xf32>
    %206 = vector.broadcast %204 : vector<32x1xf32> to vector<32x128xf32>
    %207 = vector.broadcast %205 : vector<1x128xf32> to vector<32x128xf32>
    %208 = arith.mulf %206, %207 : vector<32x128xf32>
    %209 = arith.addf %203, %208 : vector<32x128xf32>
    %210 = vector.extract_strided_slice %28 {offsets = [0, 30], sizes = [32, 1], strides = [1, 1]} : vector<32x32xf32> to vector<32x1xf32>
    %211 = vector.extract_strided_slice %26 {offsets = [30, 0], sizes = [1, 128], strides = [1, 1]} : vector<32x128xf32> to vector<1x128xf32>
    %212 = vector.broadcast %210 : vector<32x1xf32> to vector<32x128xf32>
    %213 = vector.broadcast %211 : vector<1x128xf32> to vector<32x128xf32>
    %214 = arith.mulf %212, %213 : vector<32x128xf32>
    %215 = arith.addf %209, %214 : vector<32x128xf32>
    %216 = vector.extract_strided_slice %28 {offsets = [0, 31], sizes = [32, 1], strides = [1, 1]} : vector<32x32xf32> to vector<32x1xf32>
    %217 = vector.extract_strided_slice %26 {offsets = [31, 0], sizes = [1, 128], strides = [1, 1]} : vector<32x128xf32> to vector<1x128xf32>
    %218 = vector.broadcast %216 : vector<32x1xf32> to vector<32x128xf32>
    %219 = vector.broadcast %217 : vector<1x128xf32> to vector<32x128xf32>
    %220 = arith.mulf %218, %219 : vector<32x128xf32>
    %221 = arith.addf %215, %220 : vector<32x128xf32>
    %222 = vector.broadcast %30 : vector<32x1xf32> to vector<32x128xf32>
    %223 = arith.addf %221, %222 : vector<32x128xf32>
    %cst_11 = arith.constant 0.000000e+00 : f32
    %224 = vector.broadcast %cst_11 : f32 to vector<32x128xf32>
    %225 = arith.maximumf %223, %224 : vector<32x128xf32>
    %c1 = arith.constant 1 : index
    %c0_12 = arith.constant 0 : index
    %c0_13 = arith.constant 0 : index
    %226 = vector.load %arg3[%c1, %c0_12, %c0_13] : memref<2x32x32xf32, #tpu.memory_space<vmem>>, vector<1x32x32xf32>
    %227 = vector.shape_cast %226 : vector<1x32x32xf32> to vector<32x32xf32>
    %c1_14 = arith.constant 1 : index
    %c0_15 = arith.constant 0 : index
    %c0_16 = arith.constant 0 : index
    %228 = vector.load %arg4[%c1_14, %c0_15, %c0_16] : memref<2x32x1xf32, #tpu.memory_space<vmem>>, vector<1x32x1xf32>
    %229 = vector.shape_cast %228 : vector<1x32x1xf32> to vector<32x1xf32>
    %230 = vector.extract_strided_slice %227 {offsets = [0, 0], sizes = [32, 1], strides = [1, 1]} : vector<32x32xf32> to vector<32x1xf32>
    %231 = vector.extract_strided_slice %225 {offsets = [0, 0], sizes = [1, 128], strides = [1, 1]} : vector<32x128xf32> to vector<1x128xf32>
    %232 = vector.broadcast %230 : vector<32x1xf32> to vector<32x128xf32>
    %233 = vector.broadcast %231 : vector<1x128xf32> to vector<32x128xf32>
    %234 = arith.mulf %232, %233 : vector<32x128xf32>
    %235 = vector.extract_strided_slice %227 {offsets = [0, 1], sizes = [32, 1], strides = [1, 1]} : vector<32x32xf32> to vector<32x1xf32>
    %236 = vector.extract_strided_slice %225 {offsets = [1, 0], sizes = [1, 128], strides = [1, 1]} : vector<32x128xf32> to vector<1x128xf32>
    %237 = vector.broadcast %235 : vector<32x1xf32> to vector<32x128xf32>
    %238 = vector.broadcast %236 : vector<1x128xf32> to vector<32x128xf32>
    %239 = arith.mulf %237, %238 : vector<32x128xf32>
    %240 = arith.addf %234, %239 : vector<32x128xf32>
    %241 = vector.extract_strided_slice %227 {offsets = [0, 2], sizes = [32, 1], strides = [1, 1]} : vector<32x32xf32> to vector<32x1xf32>
    %242 = vector.extract_strided_slice %225 {offsets = [2, 0], sizes = [1, 128], strides = [1, 1]} : vector<32x128xf32> to vector<1x128xf32>
    %243 = vector.broadcast %241 : vector<32x1xf32> to vector<32x128xf32>
    %244 = vector.broadcast %242 : vector<1x128xf32> to vector<32x128xf32>
    %245 = arith.mulf %243, %244 : vector<32x128xf32>
    %246 = arith.addf %240, %245 : vector<32x128xf32>
    %247 = vector.extract_strided_slice %227 {offsets = [0, 3], sizes = [32, 1], strides = [1, 1]} : vector<32x32xf32> to vector<32x1xf32>
    %248 = vector.extract_strided_slice %225 {offsets = [3, 0], sizes = [1, 128], strides = [1, 1]} : vector<32x128xf32> to vector<1x128xf32>
    %249 = vector.broadcast %247 : vector<32x1xf32> to vector<32x128xf32>
    %250 = vector.broadcast %248 : vector<1x128xf32> to vector<32x128xf32>
    %251 = arith.mulf %249, %250 : vector<32x128xf32>
    %252 = arith.addf %246, %251 : vector<32x128xf32>
    %253 = vector.extract_strided_slice %227 {offsets = [0, 4], sizes = [32, 1], strides = [1, 1]} : vector<32x32xf32> to vector<32x1xf32>
    %254 = vector.extract_strided_slice %225 {offsets = [4, 0], sizes = [1, 128], strides = [1, 1]} : vector<32x128xf32> to vector<1x128xf32>
    %255 = vector.broadcast %253 : vector<32x1xf32> to vector<32x128xf32>
    %256 = vector.broadcast %254 : vector<1x128xf32> to vector<32x128xf32>
    %257 = arith.mulf %255, %256 : vector<32x128xf32>
    %258 = arith.addf %252, %257 : vector<32x128xf32>
    %259 = vector.extract_strided_slice %227 {offsets = [0, 5], sizes = [32, 1], strides = [1, 1]} : vector<32x32xf32> to vector<32x1xf32>
    %260 = vector.extract_strided_slice %225 {offsets = [5, 0], sizes = [1, 128], strides = [1, 1]} : vector<32x128xf32> to vector<1x128xf32>
    %261 = vector.broadcast %259 : vector<32x1xf32> to vector<32x128xf32>
    %262 = vector.broadcast %260 : vector<1x128xf32> to vector<32x128xf32>
    %263 = arith.mulf %261, %262 : vector<32x128xf32>
    %264 = arith.addf %258, %263 : vector<32x128xf32>
    %265 = vector.extract_strided_slice %227 {offsets = [0, 6], sizes = [32, 1], strides = [1, 1]} : vector<32x32xf32> to vector<32x1xf32>
    %266 = vector.extract_strided_slice %225 {offsets = [6, 0], sizes = [1, 128], strides = [1, 1]} : vector<32x128xf32> to vector<1x128xf32>
    %267 = vector.broadcast %265 : vector<32x1xf32> to vector<32x128xf32>
    %268 = vector.broadcast %266 : vector<1x128xf32> to vector<32x128xf32>
    %269 = arith.mulf %267, %268 : vector<32x128xf32>
    %270 = arith.addf %264, %269 : vector<32x128xf32>
    %271 = vector.extract_strided_slice %227 {offsets = [0, 7], sizes = [32, 1], strides = [1, 1]} : vector<32x32xf32> to vector<32x1xf32>
    %272 = vector.extract_strided_slice %225 {offsets = [7, 0], sizes = [1, 128], strides = [1, 1]} : vector<32x128xf32> to vector<1x128xf32>
    %273 = vector.broadcast %271 : vector<32x1xf32> to vector<32x128xf32>
    %274 = vector.broadcast %272 : vector<1x128xf32> to vector<32x128xf32>
    %275 = arith.mulf %273, %274 : vector<32x128xf32>
    %276 = arith.addf %270, %275 : vector<32x128xf32>
    %277 = vector.extract_strided_slice %227 {offsets = [0, 8], sizes = [32, 1], strides = [1, 1]} : vector<32x32xf32> to vector<32x1xf32>
    %278 = vector.extract_strided_slice %225 {offsets = [8, 0], sizes = [1, 128], strides = [1, 1]} : vector<32x128xf32> to vector<1x128xf32>
    %279 = vector.broadcast %277 : vector<32x1xf32> to vector<32x128xf32>
    %280 = vector.broadcast %278 : vector<1x128xf32> to vector<32x128xf32>
    %281 = arith.mulf %279, %280 : vector<32x128xf32>
    %282 = arith.addf %276, %281 : vector<32x128xf32>
    %283 = vector.extract_strided_slice %227 {offsets = [0, 9], sizes = [32, 1], strides = [1, 1]} : vector<32x32xf32> to vector<32x1xf32>
    %284 = vector.extract_strided_slice %225 {offsets = [9, 0], sizes = [1, 128], strides = [1, 1]} : vector<32x128xf32> to vector<1x128xf32>
    %285 = vector.broadcast %283 : vector<32x1xf32> to vector<32x128xf32>
    %286 = vector.broadcast %284 : vector<1x128xf32> to vector<32x128xf32>
    %287 = arith.mulf %285, %286 : vector<32x128xf32>
    %288 = arith.addf %282, %287 : vector<32x128xf32>
    %289 = vector.extract_strided_slice %227 {offsets = [0, 10], sizes = [32, 1], strides = [1, 1]} : vector<32x32xf32> to vector<32x1xf32>
    %290 = vector.extract_strided_slice %225 {offsets = [10, 0], sizes = [1, 128], strides = [1, 1]} : vector<32x128xf32> to vector<1x128xf32>
    %291 = vector.broadcast %289 : vector<32x1xf32> to vector<32x128xf32>
    %292 = vector.broadcast %290 : vector<1x128xf32> to vector<32x128xf32>
    %293 = arith.mulf %291, %292 : vector<32x128xf32>
    %294 = arith.addf %288, %293 : vector<32x128xf32>
    %295 = vector.extract_strided_slice %227 {offsets = [0, 11], sizes = [32, 1], strides = [1, 1]} : vector<32x32xf32> to vector<32x1xf32>
    %296 = vector.extract_strided_slice %225 {offsets = [11, 0], sizes = [1, 128], strides = [1, 1]} : vector<32x128xf32> to vector<1x128xf32>
    %297 = vector.broadcast %295 : vector<32x1xf32> to vector<32x128xf32>
    %298 = vector.broadcast %296 : vector<1x128xf32> to vector<32x128xf32>
    %299 = arith.mulf %297, %298 : vector<32x128xf32>
    %300 = arith.addf %294, %299 : vector<32x128xf32>
    %301 = vector.extract_strided_slice %227 {offsets = [0, 12], sizes = [32, 1], strides = [1, 1]} : vector<32x32xf32> to vector<32x1xf32>
    %302 = vector.extract_strided_slice %225 {offsets = [12, 0], sizes = [1, 128], strides = [1, 1]} : vector<32x128xf32> to vector<1x128xf32>
    %303 = vector.broadcast %301 : vector<32x1xf32> to vector<32x128xf32>
    %304 = vector.broadcast %302 : vector<1x128xf32> to vector<32x128xf32>
    %305 = arith.mulf %303, %304 : vector<32x128xf32>
    %306 = arith.addf %300, %305 : vector<32x128xf32>
    %307 = vector.extract_strided_slice %227 {offsets = [0, 13], sizes = [32, 1], strides = [1, 1]} : vector<32x32xf32> to vector<32x1xf32>
    %308 = vector.extract_strided_slice %225 {offsets = [13, 0], sizes = [1, 128], strides = [1, 1]} : vector<32x128xf32> to vector<1x128xf32>
    %309 = vector.broadcast %307 : vector<32x1xf32> to vector<32x128xf32>
    %310 = vector.broadcast %308 : vector<1x128xf32> to vector<32x128xf32>
    %311 = arith.mulf %309, %310 : vector<32x128xf32>
    %312 = arith.addf %306, %311 : vector<32x128xf32>
    %313 = vector.extract_strided_slice %227 {offsets = [0, 14], sizes = [32, 1], strides = [1, 1]} : vector<32x32xf32> to vector<32x1xf32>
    %314 = vector.extract_strided_slice %225 {offsets = [14, 0], sizes = [1, 128], strides = [1, 1]} : vector<32x128xf32> to vector<1x128xf32>
    %315 = vector.broadcast %313 : vector<32x1xf32> to vector<32x128xf32>
    %316 = vector.broadcast %314 : vector<1x128xf32> to vector<32x128xf32>
    %317 = arith.mulf %315, %316 : vector<32x128xf32>
    %318 = arith.addf %312, %317 : vector<32x128xf32>
    %319 = vector.extract_strided_slice %227 {offsets = [0, 15], sizes = [32, 1], strides = [1, 1]} : vector<32x32xf32> to vector<32x1xf32>
    %320 = vector.extract_strided_slice %225 {offsets = [15, 0], sizes = [1, 128], strides = [1, 1]} : vector<32x128xf32> to vector<1x128xf32>
    %321 = vector.broadcast %319 : vector<32x1xf32> to vector<32x128xf32>
    %322 = vector.broadcast %320 : vector<1x128xf32> to vector<32x128xf32>
    %323 = arith.mulf %321, %322 : vector<32x128xf32>
    %324 = arith.addf %318, %323 : vector<32x128xf32>
    %325 = vector.extract_strided_slice %227 {offsets = [0, 16], sizes = [32, 1], strides = [1, 1]} : vector<32x32xf32> to vector<32x1xf32>
    %326 = vector.extract_strided_slice %225 {offsets = [16, 0], sizes = [1, 128], strides = [1, 1]} : vector<32x128xf32> to vector<1x128xf32>
    %327 = vector.broadcast %325 : vector<32x1xf32> to vector<32x128xf32>
    %328 = vector.broadcast %326 : vector<1x128xf32> to vector<32x128xf32>
    %329 = arith.mulf %327, %328 : vector<32x128xf32>
    %330 = arith.addf %324, %329 : vector<32x128xf32>
    %331 = vector.extract_strided_slice %227 {offsets = [0, 17], sizes = [32, 1], strides = [1, 1]} : vector<32x32xf32> to vector<32x1xf32>
    %332 = vector.extract_strided_slice %225 {offsets = [17, 0], sizes = [1, 128], strides = [1, 1]} : vector<32x128xf32> to vector<1x128xf32>
    %333 = vector.broadcast %331 : vector<32x1xf32> to vector<32x128xf32>
    %334 = vector.broadcast %332 : vector<1x128xf32> to vector<32x128xf32>
    %335 = arith.mulf %333, %334 : vector<32x128xf32>
    %336 = arith.addf %330, %335 : vector<32x128xf32>
    %337 = vector.extract_strided_slice %227 {offsets = [0, 18], sizes = [32, 1], strides = [1, 1]} : vector<32x32xf32> to vector<32x1xf32>
    %338 = vector.extract_strided_slice %225 {offsets = [18, 0], sizes = [1, 128], strides = [1, 1]} : vector<32x128xf32> to vector<1x128xf32>
    %339 = vector.broadcast %337 : vector<32x1xf32> to vector<32x128xf32>
    %340 = vector.broadcast %338 : vector<1x128xf32> to vector<32x128xf32>
    %341 = arith.mulf %339, %340 : vector<32x128xf32>
    %342 = arith.addf %336, %341 : vector<32x128xf32>
    %343 = vector.extract_strided_slice %227 {offsets = [0, 19], sizes = [32, 1], strides = [1, 1]} : vector<32x32xf32> to vector<32x1xf32>
    %344 = vector.extract_strided_slice %225 {offsets = [19, 0], sizes = [1, 128], strides = [1, 1]} : vector<32x128xf32> to vector<1x128xf32>
    %345 = vector.broadcast %343 : vector<32x1xf32> to vector<32x128xf32>
    %346 = vector.broadcast %344 : vector<1x128xf32> to vector<32x128xf32>
    %347 = arith.mulf %345, %346 : vector<32x128xf32>
    %348 = arith.addf %342, %347 : vector<32x128xf32>
    %349 = vector.extract_strided_slice %227 {offsets = [0, 20], sizes = [32, 1], strides = [1, 1]} : vector<32x32xf32> to vector<32x1xf32>
    %350 = vector.extract_strided_slice %225 {offsets = [20, 0], sizes = [1, 128], strides = [1, 1]} : vector<32x128xf32> to vector<1x128xf32>
    %351 = vector.broadcast %349 : vector<32x1xf32> to vector<32x128xf32>
    %352 = vector.broadcast %350 : vector<1x128xf32> to vector<32x128xf32>
    %353 = arith.mulf %351, %352 : vector<32x128xf32>
    %354 = arith.addf %348, %353 : vector<32x128xf32>
    %355 = vector.extract_strided_slice %227 {offsets = [0, 21], sizes = [32, 1], strides = [1, 1]} : vector<32x32xf32> to vector<32x1xf32>
    %356 = vector.extract_strided_slice %225 {offsets = [21, 0], sizes = [1, 128], strides = [1, 1]} : vector<32x128xf32> to vector<1x128xf32>
    %357 = vector.broadcast %355 : vector<32x1xf32> to vector<32x128xf32>
    %358 = vector.broadcast %356 : vector<1x128xf32> to vector<32x128xf32>
    %359 = arith.mulf %357, %358 : vector<32x128xf32>
    %360 = arith.addf %354, %359 : vector<32x128xf32>
    %361 = vector.extract_strided_slice %227 {offsets = [0, 22], sizes = [32, 1], strides = [1, 1]} : vector<32x32xf32> to vector<32x1xf32>
    %362 = vector.extract_strided_slice %225 {offsets = [22, 0], sizes = [1, 128], strides = [1, 1]} : vector<32x128xf32> to vector<1x128xf32>
    %363 = vector.broadcast %361 : vector<32x1xf32> to vector<32x128xf32>
    %364 = vector.broadcast %362 : vector<1x128xf32> to vector<32x128xf32>
    %365 = arith.mulf %363, %364 : vector<32x128xf32>
    %366 = arith.addf %360, %365 : vector<32x128xf32>
    %367 = vector.extract_strided_slice %227 {offsets = [0, 23], sizes = [32, 1], strides = [1, 1]} : vector<32x32xf32> to vector<32x1xf32>
    %368 = vector.extract_strided_slice %225 {offsets = [23, 0], sizes = [1, 128], strides = [1, 1]} : vector<32x128xf32> to vector<1x128xf32>
    %369 = vector.broadcast %367 : vector<32x1xf32> to vector<32x128xf32>
    %370 = vector.broadcast %368 : vector<1x128xf32> to vector<32x128xf32>
    %371 = arith.mulf %369, %370 : vector<32x128xf32>
    %372 = arith.addf %366, %371 : vector<32x128xf32>
    %373 = vector.extract_strided_slice %227 {offsets = [0, 24], sizes = [32, 1], strides = [1, 1]} : vector<32x32xf32> to vector<32x1xf32>
    %374 = vector.extract_strided_slice %225 {offsets = [24, 0], sizes = [1, 128], strides = [1, 1]} : vector<32x128xf32> to vector<1x128xf32>
    %375 = vector.broadcast %373 : vector<32x1xf32> to vector<32x128xf32>
    %376 = vector.broadcast %374 : vector<1x128xf32> to vector<32x128xf32>
    %377 = arith.mulf %375, %376 : vector<32x128xf32>
    %378 = arith.addf %372, %377 : vector<32x128xf32>
    %379 = vector.extract_strided_slice %227 {offsets = [0, 25], sizes = [32, 1], strides = [1, 1]} : vector<32x32xf32> to vector<32x1xf32>
    %380 = vector.extract_strided_slice %225 {offsets = [25, 0], sizes = [1, 128], strides = [1, 1]} : vector<32x128xf32> to vector<1x128xf32>
    %381 = vector.broadcast %379 : vector<32x1xf32> to vector<32x128xf32>
    %382 = vector.broadcast %380 : vector<1x128xf32> to vector<32x128xf32>
    %383 = arith.mulf %381, %382 : vector<32x128xf32>
    %384 = arith.addf %378, %383 : vector<32x128xf32>
    %385 = vector.extract_strided_slice %227 {offsets = [0, 26], sizes = [32, 1], strides = [1, 1]} : vector<32x32xf32> to vector<32x1xf32>
    %386 = vector.extract_strided_slice %225 {offsets = [26, 0], sizes = [1, 128], strides = [1, 1]} : vector<32x128xf32> to vector<1x128xf32>
    %387 = vector.broadcast %385 : vector<32x1xf32> to vector<32x128xf32>
    %388 = vector.broadcast %386 : vector<1x128xf32> to vector<32x128xf32>
    %389 = arith.mulf %387, %388 : vector<32x128xf32>
    %390 = arith.addf %384, %389 : vector<32x128xf32>
    %391 = vector.extract_strided_slice %227 {offsets = [0, 27], sizes = [32, 1], strides = [1, 1]} : vector<32x32xf32> to vector<32x1xf32>
    %392 = vector.extract_strided_slice %225 {offsets = [27, 0], sizes = [1, 128], strides = [1, 1]} : vector<32x128xf32> to vector<1x128xf32>
    %393 = vector.broadcast %391 : vector<32x1xf32> to vector<32x128xf32>
    %394 = vector.broadcast %392 : vector<1x128xf32> to vector<32x128xf32>
    %395 = arith.mulf %393, %394 : vector<32x128xf32>
    %396 = arith.addf %390, %395 : vector<32x128xf32>
    %397 = vector.extract_strided_slice %227 {offsets = [0, 28], sizes = [32, 1], strides = [1, 1]} : vector<32x32xf32> to vector<32x1xf32>
    %398 = vector.extract_strided_slice %225 {offsets = [28, 0], sizes = [1, 128], strides = [1, 1]} : vector<32x128xf32> to vector<1x128xf32>
    %399 = vector.broadcast %397 : vector<32x1xf32> to vector<32x128xf32>
    %400 = vector.broadcast %398 : vector<1x128xf32> to vector<32x128xf32>
    %401 = arith.mulf %399, %400 : vector<32x128xf32>
    %402 = arith.addf %396, %401 : vector<32x128xf32>
    %403 = vector.extract_strided_slice %227 {offsets = [0, 29], sizes = [32, 1], strides = [1, 1]} : vector<32x32xf32> to vector<32x1xf32>
    %404 = vector.extract_strided_slice %225 {offsets = [29, 0], sizes = [1, 128], strides = [1, 1]} : vector<32x128xf32> to vector<1x128xf32>
    %405 = vector.broadcast %403 : vector<32x1xf32> to vector<32x128xf32>
    %406 = vector.broadcast %404 : vector<1x128xf32> to vector<32x128xf32>
    %407 = arith.mulf %405, %406 : vector<32x128xf32>
    %408 = arith.addf %402, %407 : vector<32x128xf32>
    %409 = vector.extract_strided_slice %227 {offsets = [0, 30], sizes = [32, 1], strides = [1, 1]} : vector<32x32xf32> to vector<32x1xf32>
    %410 = vector.extract_strided_slice %225 {offsets = [30, 0], sizes = [1, 128], strides = [1, 1]} : vector<32x128xf32> to vector<1x128xf32>
    %411 = vector.broadcast %409 : vector<32x1xf32> to vector<32x128xf32>
    %412 = vector.broadcast %410 : vector<1x128xf32> to vector<32x128xf32>
    %413 = arith.mulf %411, %412 : vector<32x128xf32>
    %414 = arith.addf %408, %413 : vector<32x128xf32>
    %415 = vector.extract_strided_slice %227 {offsets = [0, 31], sizes = [32, 1], strides = [1, 1]} : vector<32x32xf32> to vector<32x1xf32>
    %416 = vector.extract_strided_slice %225 {offsets = [31, 0], sizes = [1, 128], strides = [1, 1]} : vector<32x128xf32> to vector<1x128xf32>
    %417 = vector.broadcast %415 : vector<32x1xf32> to vector<32x128xf32>
    %418 = vector.broadcast %416 : vector<1x128xf32> to vector<32x128xf32>
    %419 = arith.mulf %417, %418 : vector<32x128xf32>
    %420 = arith.addf %414, %419 : vector<32x128xf32>
    %421 = vector.broadcast %229 : vector<32x1xf32> to vector<32x128xf32>
    %422 = arith.addf %420, %421 : vector<32x128xf32>
    %cst_17 = arith.constant 0.000000e+00 : f32
    %423 = vector.broadcast %cst_17 : f32 to vector<32x128xf32>
    %424 = arith.maximumf %422, %423 : vector<32x128xf32>
    %425 = vector.broadcast %2 : vector<32x1xf32> to vector<32x128xf32>
    %426 = arith.mulf %424, %425 : vector<32x128xf32>
    %cst_18 = arith.constant dense<0.000000e+00> : vector<128xf32>
    %427 = vector.multi_reduction <add>, %426, %cst_18 [0] : vector<32x128xf32> to vector<128xf32>
    %428 = vector.shape_cast %427 : vector<128xf32> to vector<1x128xf32>
    %429 = vector.broadcast %3 : vector<1x1xf32> to vector<1x128xf32>
    %430 = arith.addf %428, %429 : vector<1x128xf32>
    %cst_19 = arith.constant 2.000000e+01 : f32
    %431 = vector.broadcast %cst_19 : f32 to vector<1x128xf32>
    %432 = arith.cmpf ogt, %430, %431 : vector<1x128xf32>
    %cst_20 = arith.constant 2.000000e+01 : f32
    %433 = vector.broadcast %cst_20 : f32 to vector<1x128xf32>
    %434 = arith.minimumf %430, %433 : vector<1x128xf32>
    %435 = math.exp %434 : vector<1x128xf32>
    %436 = math.log1p %435 : vector<1x128xf32>
    %437 = arith.select %432, %430, %436 : vector<1x128xi1>, vector<1x128xf32>
    %c0_21 = arith.constant 0 : index
    %c0_22 = arith.constant 0 : index
    %438 = vector.load %arg6[%c0_21, %c0_22] : memref<1x128xf32, #tpu.memory_space<vmem>>, vector<1x128xf32>
    tpu.vector_store %arg6[%c0_21, %c0_22], %437 {strides = array<i32>} : memref<1x128xf32, #tpu.memory_space<vmem>>, vector<1x128xf32>,
    return
  }
  func.func @transform_0(%arg0: i32) -> (i32, i32) {
    %c0_i32 = arith.constant 0 : i32
    %c0_i32_0 = arith.constant 0 : i32
    return %c0_i32, %arg0 : i32, i32
  }
  func.func @transform_1(%arg0: i32) -> (i32, i32) {
    %c0_i32 = arith.constant 0 : i32
    %c0_i32_0 = arith.constant 0 : i32
    %c0_i32_1 = arith.constant 0 : i32
    return %c0_i32, %c0_i32_0 : i32, i32
  }
  func.func @transform_2(%arg0: i32) -> (i32, i32, i32) {
    %c0_i32 = arith.constant 0 : i32
    %c0_i32_0 = arith.constant 0 : i32
    %c0_i32_1 = arith.constant 0 : i32
    %c0_i32_2 = arith.constant 0 : i32
    return %c0_i32, %c0_i32_0, %c0_i32_1 : i32, i32, i32
  }
  func.func @transform_3(%arg0: i32) -> (i32, i32, i32) {
    %c0_i32 = arith.constant 0 : i32
    %c0_i32_0 = arith.constant 0 : i32
    %c0_i32_1 = arith.constant 0 : i32
    %c0_i32_2 = arith.constant 0 : i32
    return %c0_i32, %c0_i32_0, %c0_i32_1 : i32, i32, i32
  }
  func.func @transform_4(%arg0: i32) -> (i32, i32) {
    %c0_i32 = arith.constant 0 : i32
    %c0_i32_0 = arith.constant 0 : i32
    %c0_i32_1 = arith.constant 0 : i32
    return %c0_i32, %c0_i32_0 : i32, i32
  }
  func.func @transform_5(%arg0: i32) -> (i32, i32) {
    %c0_i32 = arith.constant 0 : i32
    %c0_i32_0 = arith.constant 0 : i32
    return %c0_i32, %arg0 : i32, i32
  }
}

</mosaic_0001>

<llo_original>
// kernel: tpu_custom_call.1
$region0: #{tpu_custom_call.1}
  #allocation0 [shape = 'u32[]', space=smem, size = 0x4, offset = 0x4, fixed_abs, tag = 'smem constant byte address 0x4 - core index']
  #allocation1 [shape = 'u32[144,128]{1,0:T(1,128)}', space=vmem, size = 0x12000, scoped, tag = 'internal scratch']
  %s0 = inlined_call_operand.vmem [shape: f32[3,384], index: 0, kind: input, shape index: {}]
  %s1 = inlined_call_operand.vmem [shape: f32[32,4], index: 1, kind: input, shape index: {}]
  %s2 = inlined_call_operand.vmem [shape: f32[2,32,32], index: 2, kind: input, shape index: {}]
  %s3 = inlined_call_operand.vmem [shape: f32[2,32,1], index: 3, kind: input, shape index: {}]
  %s4 = inlined_call_operand.vmem [shape: f32[33,1], index: 4, kind: input, shape index: {}]
  %s5 = inlined_call_operand.hbm [shape: f32[1,384], index: 5, kind: output, shape index: {}]
  %s6 = sld [smem:[#allocation0]]
  $region53: #{tpu_custom_call.1} parent=0
    _
  %s8 = ssub.s32 1, %s6
  %s9 = scalar_select 0, %s8, %s6
  $region1: #{tpu_custom_call.1} parent=0
    #allocation2 [shape = 'u8[1024]{0}', space=vmem, size = 0x400, scoped, tag = 'output window, operand 0']
    #allocation3 [shape = 's32[2]{0}', space=sflag, size = 0x8, scoped, tag = 'scoped memory for tpu_custom_call.1']
    %10 = vsyncpa [#allocation3], 0
    %s11 = scalar_lea.sflag [#allocation3], 1
    %12 = vsyncpa %s11, 0
    loop: start=0, step=1, limit=5
    $region2: #{tpu_custom_call.1} parent=1 // loop_pre_header
      _
    $region3: #{tpu_custom_call.1} parent=1 // loop_header
      %s14 = sphi 0, %s18
      %p15 = scmp.ge.s32.totalorder %s14, 5
      %s24 = sphi 0, %s26
      %s27 = sphi 0, %s24
      %s28 = sphi 0, %s27
      %s44 = sphi 0, %s28
      %s48 = sphi 0, %s48
      %s50 = sphi 0, %s48
      %s51 = sphi 0, %s50
      %s65 = sphi 0, %s51
      %s69 = sphi 0, %s69
      %s71 = sphi 0, %s69
      %s72 = sphi 0, %s71
      %s86 = sphi 0, %s72
      %s90 = sphi 0, %s90
      %s92 = sphi 0, %s90
      %s93 = sphi 0, %s92
      %s107 = sphi 0, %s93
      %s111 = sphi 0, %s111
      %s113 = sphi 0, %s111
      %s114 = sphi 0, %s113
      %s128 = sphi 0, %s114
      %s134 = sphi 0, %s136
      %s137 = sphi 0, %s134
      %s138 = sphi 0, %s137
      %s154 = sphi 0, %s138
    $region4: #{tpu_custom_call.1} parent=1 // loop_header_branch
      %17 = sbr.rel (%p15) target = $region8
    $region5: #{tpu_custom_call.1} parent=1 // loop_body
      %s19 = ssub.s32 %s14, 1
      %s20 = ssub.s32 %s14, 2
      %s21 = sadd.s32 %s14, 1
      %s22 = ssub.s32 %s14, %s21
      %p23 = scmp.eq.s32.totalorder %s22, 0
      %s25 = sadd.s32 %s24, 1
      %s26 = scalar_select %p23, %s24, %s25
      %p29 = pneg %p23
      %p30 = scmp.eq.s32.totalorder %s14, 2
      %p31 = por %p29, %p30
      %p32 = scmp.ne.s32.totalorder %s24, %s27
      %p33 = scmp.eq.s32.totalorder %s14, 0
      %p34 = por %p32, %p33
      %p35 = scmp.ne.s32.totalorder %s24, %s27
      %p36 = scmp.eq.s32.totalorder %s19, 2
      %p37 = por %p35, %p36
      %p38 = scmp.ne.s32.totalorder %s27, %s28
      %p39 = scmp.eq.s32.totalorder %s19, 0
      %p40 = por %p38, %p39
      %p41 = scmp.ne.s32.totalorder %s27, %s28
      %p42 = scmp.eq.s32.totalorder %s20, 2
      %p43 = por %p41, %p42
      %p45 = scmp.ne.s32.totalorder %s28, %s44
      %p46 = scmp.eq.s32.totalorder %s20, 0
      %p47 = por %p45, %p46
      %s49 = sadd.s32 %s48, 1
      %p52 = scmp.eq.s32.totalorder %s14, 2
      %p53 = scmp.ne.s32.totalorder %s48, %s50
      %p54 = scmp.eq.s32.totalorder %s14, 0
      %p55 = por %p53, %p54
      %p56 = scmp.ne.s32.totalorder %s48, %s50
      %p57 = scmp.eq.s32.totalorder %s19, 2
      %p58 = por %p56, %p57
      %p59 = scmp.ne.s32.totalorder %s50, %s51
      %p60 = scmp.eq.s32.totalorder %s19, 0
      %p61 = por %p59, %p60
      %p62 = scmp.ne.s32.totalorder %s50, %s51
      %p63 = scmp.eq.s32.totalorder %s20, 2
      %p64 = por %p62, %p63
      %p66 = scmp.ne.s32.totalorder %s51, %s65
      %p67 = scmp.eq.s32.totalorder %s20, 0
      %p68 = por %p66, %p67
      %s70 = sadd.s32 %s69, 1
      %p73 = scmp.eq.s32.totalorder %s14, 2
      %p74 = scmp.ne.s32.totalorder %s69, %s71
      %p75 = scmp.eq.s32.totalorder %s14, 0
      %p76 = por %p74, %p75
      %p77 = scmp.ne.s32.totalorder %s69, %s71
      %p78 = scmp.eq.s32.totalorder %s19, 2
      %p79 = por %p77, %p78
      %p80 = scmp.ne.s32.totalorder %s71, %s72
      %p81 = scmp.eq.s32.totalorder %s19, 0
      %p82 = por %p80, %p81
      %p83 = scmp.ne.s32.totalorder %s71, %s72
      %p84 = scmp.eq.s32.totalorder %s20, 2
      %p85 = por %p83, %p84
      %p87 = scmp.ne.s32.totalorder %s72, %s86
      %p88 = scmp.eq.s32.totalorder %s20, 0
      %p89 = por %p87, %p88
      %s91 = sadd.s32 %s90, 1
      %p94 = scmp.eq.s32.totalorder %s14, 2
      %p95 = scmp.ne.s32.totalorder %s90, %s92
      %p96 = scmp.eq.s32.totalorder %s14, 0
      %p97 = por %p95, %p96
      %p98 = scmp.ne.s32.totalorder %s90, %s92
      %p99 = scmp.eq.s32.totalorder %s19, 2
      %p100 = por %p98, %p99
      %p101 = scmp.ne.s32.totalorder %s92, %s93
      %p102 = scmp.eq.s32.totalorder %s19, 0
      %p103 = por %p101, %p102
      %p104 = scmp.ne.s32.totalorder %s92, %s93
      %p105 = scmp.eq.s32.totalorder %s20, 2
      %p106 = por %p104, %p105
      %p108 = scmp.ne.s32.totalorder %s93, %s107
      %p109 = scmp.eq.s32.totalorder %s20, 0
      %p110 = por %p108, %p109
      %s112 = sadd.s32 %s111, 1
      %p115 = scmp.eq.s32.totalorder %s14, 2
      %p116 = scmp.ne.s32.totalorder %s111, %s113
      %p117 = scmp.eq.s32.totalorder %s14, 0
      %p118 = por %p116, %p117
      %p119 = scmp.ne.s32.totalorder %s111, %s113
      %p120 = scmp.eq.s32.totalorder %s19, 2
      %p121 = por %p119, %p120
      %p122 = scmp.ne.s32.totalorder %s113, %s114
      %p123 = scmp.eq.s32.totalorder %s19, 0
      %p124 = por %p122, %p123
      %p125 = scmp.ne.s32.totalorder %s113, %s114
      %p126 = scmp.eq.s32.totalorder %s20, 2
      %p127 = por %p125, %p126
      %p129 = scmp.ne.s32.totalorder %s114, %s128
      %p130 = scmp.eq.s32.totalorder %s20, 0
      %p131 = por %p129, %p130
      %s132 = ssub.s32 %s14, %s21
      %p133 = scmp.eq.s32.totalorder %s132, 0
      %s135 = sadd.s32 %s134, 1
      %s136 = scalar_select %p133, %s134, %s135
      %p139 = pneg %p133
      %p140 = scmp.eq.s32.totalorder %s14, 2
      %p141 = por %p139, %p140
      %p142 = scmp.ne.s32.totalorder %s134, %s137
      %p143 = scmp.eq.s32.totalorder %s14, 0
      %p144 = por %p142, %p143
      %p145 = scmp.ne.s32.totalorder %s134, %s137
      %p146 = scmp.eq.s32.totalorder %s19, 2
      %p147 = por %p145, %p146
      %p148 = scmp.ne.s32.totalorder %s137, %s138
      %p149 = scmp.eq.s32.totalorder %s19, 0
      %p150 = por %p148, %p149
      %p151 = scmp.ne.s32.totalorder %s137, %s138
      %p152 = scmp.eq.s32.totalorder %s20, 2
      %p153 = por %p151, %p152
      %p155 = scmp.ne.s32.totalorder %s138, %s154
      %p156 = scmp.eq.s32.totalorder %s20, 0
      %p157 = por %p155, %p156
      %p158 = scmp.le.s32.totalorder 1, %s14
      %p159 = scmp.lt.s32.totalorder %s14, 4
      %p160 = pnand %p158, %p159
      %p161 = pneg %p160
      // Predicated region
      $region9: #{tpu_custom_call.1} parent=5 // pred_check
        _
      $region10: #{tpu_custom_call.1} parent=5 // pred_check_branch
        %163 = sbr.rel (%p160) target = $region12
      $region11: #{tpu_custom_call.1} parent=5 // pred_region
        %s164 = ssub.s32 %s14, 1
        // Predicated region
        $region13: #{tpu_custom_call.1} parent=11 // pred_check
          %p165 = pneg %p61
        $region14: #{tpu_custom_call.1} parent=11 // pred_check_branch
          %167 = sbr.rel (%p165) target = $region16
        $region15: #{tpu_custom_call.1} parent=11 // pred_region
          _
        $region16: #{tpu_custom_call.1} parent=11 // pred_fallthru
          _
        // Predicated region
        $region17: #{tpu_custom_call.1} parent=11 // pred_check
          %p168 = pneg %p82
        $region18: #{tpu_custom_call.1} parent=11 // pred_check_branch
          %170 = sbr.rel (%p168) target = $region20
        $region19: #{tpu_custom_call.1} parent=11 // pred_region
          _
        $region20: #{tpu_custom_call.1} parent=11 // pred_fallthru
          _
        // Predicated region
        $region21: #{tpu_custom_call.1} parent=11 // pred_check
          %p171 = pneg %p103
        $region22: #{tpu_custom_call.1} parent=11 // pred_check_branch
          %173 = sbr.rel (%p171) target = $region24
        $region23: #{tpu_custom_call.1} parent=11 // pred_region
          _
        $region24: #{tpu_custom_call.1} parent=11 // pred_fallthru
          _
        // Predicated region
        $region25: #{tpu_custom_call.1} parent=11 // pred_check
          %p174 = pneg %p124
        $region26: #{tpu_custom_call.1} parent=11 // pred_check_branch
          %176 = sbr.rel (%p174) target = $region28
        $region27: #{tpu_custom_call.1} parent=11 // pred_region
          _
        $region28: #{tpu_custom_call.1} parent=11 // pred_fallthru
          _
      $region12: #{tpu_custom_call.1} parent=5 // pred_fallthru
        _
      %p177 = scmp.lt.s32.totalorder %s14, 3
      // Predicated region
      $region29: #{tpu_custom_call.1} parent=5 // pred_check
        %p178 = pneg %p177
      $region30: #{tpu_custom_call.1} parent=5 // pred_check_branch
        %180 = sbr.rel (%p178) target = $region32
      $region31: #{tpu_custom_call.1} parent=5 // pred_region
        // Predicated region
        $region33: #{tpu_custom_call.1} parent=31 // pred_check
          %p181 = pneg %p34
        $region34: #{tpu_custom_call.1} parent=31 // pred_check_branch
          %183 = sbr.rel (%p181) target = $region36
        $region35: #{tpu_custom_call.1} parent=31 // pred_region
          %p184 = scmp.lt.s32.totalorder %s14, 2
          %s185 = scalar_select %p184, %s14, 2
          %s186 = smul.addr %s185, 4
          %s187 = scalar_lea.vmem %s0, %s186
        $region36: #{tpu_custom_call.1} parent=31 // pred_fallthru
          _
      $region32: #{tpu_custom_call.1} parent=5 // pred_fallthru
        _
      %p188 = scmp.le.s32.totalorder 1, %s14
      %p189 = scmp.lt.s32.totalorder %s14, 4
      %p190 = pnand %p188, %p189
      %p191 = pneg %p190
      // Predicated region
      $region37: #{tpu_custom_call.1} parent=5 // pred_check
        _
      $region38: #{tpu_custom_call.1} parent=5 // pred_check_branch
        %193 = sbr.rel (%p190) target = $region40
      $region39: #{tpu_custom_call.1} parent=5 // pred_region
        %s194 = ssub.s32 %s14, 1
        %p195 = scmp.lt.s32.totalorder %s19, 2
        %s196 = scalar_select %p195, %s19, 2
        %s197 = smul.addr %s196, 4
        %s198 = scalar_lea.vmem %s0, %s197
        %p199 = pneg %p40
        %p200 = pneg %p37
        %p201 = pneg %p61
        %p202 = pneg %p58
        %p203 = pneg %p82
        %p204 = pneg %p79
        %p205 = pneg %p103
        %p206 = pneg %p100
        %p207 = pneg %p124
        %p208 = pneg %p121
        %p209 = pneg %p150
        %p210 = pneg %p147
        %s211 = sand.u32 %s137, 1
        %s212 = scalar_lea.sflag [#allocation3], %s211
        %s213 = sand.u32 %s137, 1
        %s214 = scalar_lea.vmem [#allocation2], %s213
        %p215 = scmp.lt.s32.totalorder %s19, 2
        %s216 = scalar_select %p215, %s19, 2
        %s217 = smul.addr %s216, 4
        %s218 = scalar_lea.vmem %s0, %s217
        %v219 = vld [vmem:[%s1] sm:$0xff]
        %v220 = vld [vmem:[%s1 + $0x8] sm:$0xff]
        %v221 = vld [vmem:[%s1 + $0x10] sm:$0xff]
        %v222 = vld [vmem:[%s1 + $0x18] sm:$0xff]
        %v223 = vld [vmem:[%s4] sm:$0xff]
        %v224 = vld [vmem:[%s4 + $0x8] sm:$0xff]
        %v225 = vld [vmem:[%s4 + $0x10] sm:$0xff]
        %v226 = vld [vmem:[%s4 + $0x18] sm:$0xff]
        %v227 = vld [vmem:[%s4 + $0x20] sm:$0x1]
        %v228 = vld [vmem:[%s218] sm:$0x7]
        %230 = vset.pattern.permute.xlu0 0
        %231 = vperm.xlu0 %230, %v219
        %v232 = vpop.permute.xlu0 %231
        %235 = vset.pattern.permute.xlu0 0
        %236 = vperm.xlu0 %235, %v220
        %v237 = vpop.permute.xlu0 %236
        %240 = vset.pattern.permute.xlu0 0
        %241 = vperm.xlu0 %240, %v221
        %v242 = vpop.permute.xlu0 %241
        %245 = vset.pattern.permute.xlu0 0
        %246 = vperm.xlu0 %245, %v222
        %v247 = vpop.permute.xlu0 %246
        %v249 = vlaneseq
        %v250 = vshrl.u32 %v249, 7
        %v251 = vsub.s32 0, %v250
        %v252 = vrot.slane %v228, %v251
        %v253 = vmul.f32 %v232, %v252
        %v254 = vmul.f32 %v237, %v252
        %v255 = vmul.f32 %v242, %v252
        %v256 = vmul.f32 %v247, %v252
        %257 = vset.pattern.permute.xlu0 1
        %258 = vperm.xlu0 %257, %v219
        %v259 = vpop.permute.xlu0 %258
        %261 = vset.pattern.permute.xlu0 1
        %262 = vperm.xlu0 %261, %v220
        %v263 = vpop.permute.xlu0 %262
        %265 = vset.pattern.permute.xlu0 1
        %266 = vperm.xlu0 %265, %v221
        %v267 = vpop.permute.xlu0 %266
        %269 = vset.pattern.permute.xlu0 1
        %270 = vperm.xlu0 %269, %v222
        %v271 = vpop.permute.xlu0 %270
        %v273 = vlaneseq
        %v274 = vshrl.u32 %v273, 7
        %v275 = vsub.s32 1, %v274
        %v276 = vrot.slane %v228, %v275
        %v277 = vmul.f32 %v259, %v276
        %v278 = vmul.f32 %v263, %v276
        %v279 = vmul.f32 %v267, %v276
        %v280 = vmul.f32 %v271, %v276
        %v281 = vadd.f32 %v253, %v277
        %v282 = vadd.f32 %v254, %v278
        %v283 = vadd.f32 %v255, %v279
        %v284 = vadd.f32 %v256, %v280
        %285 = vset.pattern.permute.xlu0 2
        %286 = vperm.xlu0 %285, %v219
        %v287 = vpop.permute.xlu0 %286
        %289 = vset.pattern.permute.xlu0 2
        %290 = vperm.xlu0 %289, %v220
        %v291 = vpop.permute.xlu0 %290
        %293 = vset.pattern.permute.xlu0 2
        %294 = vperm.xlu0 %293, %v221
        %v295 = vpop.permute.xlu0 %294
        %297 = vset.pattern.permute.xlu0 2
        %298 = vperm.xlu0 %297, %v222
        %v299 = vpop.permute.xlu0 %298
        %v301 = vlaneseq
        %v302 = vshrl.u32 %v301, 7
        %v303 = vsub.s32 2, %v302
        %v304 = vrot.slane %v228, %v303
        %v305 = vmul.f32 %v287, %v304
        %v306 = vmul.f32 %v291, %v304
        %v307 = vmul.f32 %v295, %v304
        %v308 = vmul.f32 %v299, %v304
        %v309 = vadd.f32 %v281, %v305
        %v310 = vadd.f32 %v282, %v306
        %v311 = vadd.f32 %v283, %v307
        %v312 = vadd.f32 %v284, %v308
        %313 = vset.pattern.permute.xlu0 3
        %314 = vperm.xlu0 %313, %v219
        %v315 = vpop.permute.xlu0 %314
        %317 = vset.pattern.permute.xlu0 3
        %318 = vperm.xlu0 %317, %v220
        %v319 = vpop.permute.xlu0 %318
        %321 = vset.pattern.permute.xlu0 3
        %322 = vperm.xlu0 %321, %v221
        %v323 = vpop.permute.xlu0 %322
        %325 = vset.pattern.permute.xlu0 3
        %326 = vperm.xlu0 %325, %v222
        %v327 = vpop.permute.xlu0 %326
        %v329 = vadd.f32 %v309, %v315
        %v330 = vadd.f32 %v310, %v319
        %v331 = vadd.f32 %v311, %v323
        %v332 = vadd.f32 %v312, %v327
        %v333 = vmax.f32 %v329, 0.0
        %v334 = vmax.f32 %v330, 0.0
        %v335 = vmax.f32 %v331, 0.0
        %v336 = vmax.f32 %v332, 0.0
        %v337 = vld [vmem:[%s2] sm:$0xff]
        %v338 = vld [vmem:[%s2 + $0x8] sm:$0xff]
        %v339 = vld [vmem:[%s2 + $0x10] sm:$0xff]
        %v340 = vld [vmem:[%s2 + $0x18] sm:$0xff]
        %v341 = vld [vmem:[%s3] sm:$0xff]
        %v342 = vld [vmem:[%s3 + $0x8] sm:$0xff]
        %v343 = vld [vmem:[%s3 + $0x10] sm:$0xff]
        %v344 = vld [vmem:[%s3 + $0x18] sm:$0xff]
        %346 = vset.pattern.permute.xlu0 0
        %347 = vperm.xlu0 %346, %v337
        %v348 = vpop.permute.xlu0 %347
        %351 = vset.pattern.permute.xlu0 0
        %352 = vperm.xlu0 %351, %v338
        %v353 = vpop.permute.xlu0 %352
        %356 = vset.pattern.permute.xlu0 0
        %357 = vperm.xlu0 %356, %v339
        %v358 = vpop.permute.xlu0 %357
        %361 = vset.pattern.permute.xlu0 0
        %362 = vperm.xlu0 %361, %v340
        %v363 = vpop.permute.xlu0 %362
        %v365 = vlaneseq
        %v366 = vshrl.u32 %v365, 7
        %v367 = vsub.s32 0, %v366
        %v368 = vrot.slane %v333, %v367
        %v369 = vmul.f32 %v348, %v368
        %v370 = vmul.f32 %v353, %v368
        %v371 = vmul.f32 %v358, %v368
        %v372 = vmul.f32 %v363, %v368
        %373 = vset.pattern.permute.xlu0 1
        %374 = vperm.xlu0 %373, %v337
        %v375 = vpop.permute.xlu0 %374
        %377 = vset.pattern.permute.xlu0 1
        %378 = vperm.xlu0 %377, %v338
        %v379 = vpop.permute.xlu0 %378
        %381 = vset.pattern.permute.xlu0 1
        %382 = vperm.xlu0 %381, %v339
        %v383 = vpop.permute.xlu0 %382
        %385 = vset.pattern.permute.xlu0 1
        %386 = vperm.xlu0 %385, %v340
        %v387 = vpop.permute.xlu0 %386
        %v389 = vlaneseq
        %v390 = vshrl.u32 %v389, 7
        %v391 = vsub.s32 1, %v390
        %v392 = vrot.slane %v333, %v391
        %v393 = vmul.f32 %v375, %v392
        %v394 = vmul.f32 %v379, %v392
        %v395 = vmul.f32 %v383, %v392
        %v396 = vmul.f32 %v387, %v392
        %v397 = vadd.f32 %v369, %v393
        %v398 = vadd.f32 %v370, %v394
        %v399 = vadd.f32 %v371, %v395
        %v400 = vadd.f32 %v372, %v396
        %401 = vset.pattern.permute.xlu0 2
        %402 = vperm.xlu0 %401, %v337
        %v403 = vpop.permute.xlu0 %402
        %405 = vset.pattern.permute.xlu0 2
        %406 = vperm.xlu0 %405, %v338
        %v407 = vpop.permute.xlu0 %406
        %409 = vset.pattern.permute.xlu0 2
        %410 = vperm.xlu0 %409, %v339
        %v411 = vpop.permute.xlu0 %410
        %413 = vset.pattern.permute.xlu0 2
        %414 = vperm.xlu0 %413, %v340
        %v415 = vpop.permute.xlu0 %414
        %v417 = vlaneseq
        %v418 = vshrl.u32 %v417, 7
        %v419 = vsub.s32 2, %v418
        %v420 = vrot.slane %v333, %v419
        %v421 = vmul.f32 %v403, %v420
        %v422 = vmul.f32 %v407, %v420
        %v423 = vmul.f32 %v411, %v420
        %v424 = vmul.f32 %v415, %v420
        %v425 = vadd.f32 %v397, %v421
        %v426 = vadd.f32 %v398, %v422
        %v427 = vadd.f32 %v399, %v423
        %v428 = vadd.f32 %v400, %v424
        %429 = vset.pattern.permute.xlu0 3
        %430 = vperm.xlu0 %429, %v337
        %v431 = vpop.permute.xlu0 %430
        %433 = vset.pattern.permute.xlu0 3
        %434 = vperm.xlu0 %433, %v338
        %v435 = vpop.permute.xlu0 %434
        %437 = vset.pattern.permute.xlu0 3
        %438 = vperm.xlu0 %437, %v339
        %v439 = vpop.permute.xlu0 %438
        %441 = vset.pattern.permute.xlu0 3
        %442 = vperm.xlu0 %441, %v340
        %v443 = vpop.permute.xlu0 %442
        %v445 = vlaneseq
        %v446 = vshrl.u32 %v445, 7
        %v447 = vsub.s32 3, %v446
        %v448 = vrot.slane %v333, %v447
        %v449 = vmul.f32 %v431, %v448
        %v450 = vmul.f32 %v435, %v448
        %v451 = vmul.f32 %v439, %v448
        %v452 = vmul.f32 %v443, %v448
        %v453 = vadd.f32 %v425, %v449
        %v454 = vadd.f32 %v426, %v450
        %v455 = vadd.f32 %v427, %v451
        %v456 = vadd.f32 %v428, %v452
        %457 = vset.pattern.permute.xlu0 4
        %458 = vperm.xlu0 %457, %v337
        %v459 = vpop.permute.xlu0 %458
        %461 = vset.pattern.permute.xlu0 4
        %462 = vperm.xlu0 %461, %v338
        %v463 = vpop.permute.xlu0 %462
        %465 = vset.pattern.permute.xlu0 4
        %466 = vperm.xlu0 %465, %v339
        %v467 = vpop.permute.xlu0 %466
        %469 = vset.pattern.permute.xlu0 4
        %470 = vperm.xlu0 %469, %v340
        %v471 = vpop.permute.xlu0 %470
        %v473 = vlaneseq
        %v474 = vshrl.u32 %v473, 7
        %v475 = vsub.s32 4, %v474
        %v476 = vrot.slane %v333, %v475
        %v477 = vmul.f32 %v459, %v476
        %v478 = vmul.f32 %v463, %v476
        %v479 = vmul.f32 %v467, %v476
        %v480 = vmul.f32 %v471, %v476
        %v481 = vadd.f32 %v453, %v477
        %v482 = vadd.f32 %v454, %v478
        %v483 = vadd.f32 %v455, %v479
        %v484 = vadd.f32 %v456, %v480
        %485 = vset.pattern.permute.xlu0 5
        %486 = vperm.xlu0 %485, %v337
        %v487 = vpop.permute.xlu0 %486
        %489 = vset.pattern.permute.xlu0 5
        %490 = vperm.xlu0 %489, %v338
        %v491 = vpop.permute.xlu0 %490
        %493 = vset.pattern.permute.xlu0 5
        %494 = vperm.xlu0 %493, %v339
        %v495 = vpop.permute.xlu0 %494
        %497 = vset.pattern.permute.xlu0 5
        %498 = vperm.xlu0 %497, %v340
        %v499 = vpop.permute.xlu0 %498
        %v501 = vlaneseq
        %v502 = vshrl.u32 %v501, 7
        %v503 = vsub.s32 5, %v502
        %v504 = vrot.slane %v333, %v503
        %v505 = vmul.f32 %v487, %v504
        %v506 = vmul.f32 %v491, %v504
        %v507 = vmul.f32 %v495, %v504
        %v508 = vmul.f32 %v499, %v504
        %v509 = vadd.f32 %v481, %v505
        %v510 = vadd.f32 %v482, %v506
        %v511 = vadd.f32 %v483, %v507
        %v512 = vadd.f32 %v484, %v508
        %513 = vset.pattern.permute.xlu0 6
        %514 = vperm.xlu0 %513, %v337
        %v515 = vpop.permute.xlu0 %514
        %517 = vset.pattern.permute.xlu0 6
        %518 = vperm.xlu0 %517, %v338
        %v519 = vpop.permute.xlu0 %518
        %521 = vset.pattern.permute.xlu0 6
        %522 = vperm.xlu0 %521, %v339
        %v523 = vpop.permute.xlu0 %522
        %525 = vset.pattern.permute.xlu0 6
        %526 = vperm.xlu0 %525, %v340
        %v527 = vpop.permute.xlu0 %526
        %v529 = vlaneseq
        %v530 = vshrl.u32 %v529, 7
        %v531 = vsub.s32 6, %v530
        %v532 = vrot.slane %v333, %v531
        %v533 = vmul.f32 %v515, %v532
        %v534 = vmul.f32 %v519, %v532
        %v535 = vmul.f32 %v523, %v532
        %v536 = vmul.f32 %v527, %v532
        %v537 = vadd.f32 %v509, %v533
        %v538 = vadd.f32 %v510, %v534
        %v539 = vadd.f32 %v511, %v535
        %v540 = vadd.f32 %v512, %v536
        %541 = vset.pattern.permute.xlu0 7
        %542 = vperm.xlu0 %541, %v337
        %v543 = vpop.permute.xlu0 %542
        %545 = vset.pattern.permute.xlu0 7
        %546 = vperm.xlu0 %545, %v338
        %v547 = vpop.permute.xlu0 %546
        %549 = vset.pattern.permute.xlu0 7
        %550 = vperm.xlu0 %549, %v339
        %v551 = vpop.permute.xlu0 %550
        %553 = vset.pattern.permute.xlu0 7
        %554 = vperm.xlu0 %553, %v340
        %v555 = vpop.permute.xlu0 %554
        %v557 = vlaneseq
        %v558 = vshrl.u32 %v557, 7
        %v559 = vsub.s32 7, %v558
        %v560 = vrot.slane %v333, %v559
        %v561 = vmul.f32 %v543, %v560
        %v562 = vmul.f32 %v547, %v560
        %v563 = vmul.f32 %v551, %v560
        %v564 = vmul.f32 %v555, %v560
        %v565 = vadd.f32 %v537, %v561
        %v566 = vadd.f32 %v538, %v562
        %v567 = vadd.f32 %v539, %v563
        %v568 = vadd.f32 %v540, %v564
        %569 = vset.pattern.permute.xlu0 8
        %570 = vperm.xlu0 %569, %v337
        %v571 = vpop.permute.xlu0 %570
        %573 = vset.pattern.permute.xlu0 8
        %574 = vperm.xlu0 %573, %v338
        %v575 = vpop.permute.xlu0 %574
        %577 = vset.pattern.permute.xlu0 8
        %578 = vperm.xlu0 %577, %v339
        %v579 = vpop.permute.xlu0 %578
        %581 = vset.pattern.permute.xlu0 8
        %582 = vperm.xlu0 %581, %v340
        %v583 = vpop.permute.xlu0 %582
        %v585 = vlaneseq
        %v586 = vshrl.u32 %v585, 7
        %v587 = vsub.s32 0, %v586
        %v588 = vrot.slane %v334, %v587
        %v589 = vmul.f32 %v571, %v588
        %v590 = vmul.f32 %v575, %v588
        %v591 = vmul.f32 %v579, %v588
        %v592 = vmul.f32 %v583, %v588
        %v593 = vadd.f32 %v565, %v589
        %v594 = vadd.f32 %v566, %v590
        %v595 = vadd.f32 %v567, %v591
        %v596 = vadd.f32 %v568, %v592
        %597 = vset.pattern.permute.xlu0 9
        %598 = vperm.xlu0 %597, %v337
        %v599 = vpop.permute.xlu0 %598
        %601 = vset.pattern.permute.xlu0 9
        %602 = vperm.xlu0 %601, %v338
        %v603 = vpop.permute.xlu0 %602
        %605 = vset.pattern.permute.xlu0 9
        %606 = vperm.xlu0 %605, %v339
        %v607 = vpop.permute.xlu0 %606
        %609 = vset.pattern.permute.xlu0 9
        %610 = vperm.xlu0 %609, %v340
        %v611 = vpop.permute.xlu0 %610
        %v613 = vlaneseq
        %v614 = vshrl.u32 %v613, 7
        %v615 = vsub.s32 1, %v614
        %v616 = vrot.slane %v334, %v615
        %v617 = vmul.f32 %v599, %v616
        %v618 = vmul.f32 %v603, %v616
        %v619 = vmul.f32 %v607, %v616
        %v620 = vmul.f32 %v611, %v616
        %v621 = vadd.f32 %v593, %v617
        %v622 = vadd.f32 %v594, %v618
        %v623 = vadd.f32 %v595, %v619
        %v624 = vadd.f32 %v596, %v620
        %625 = vset.pattern.permute.xlu0 10
        %626 = vperm.xlu0 %625, %v337
        %v627 = vpop.permute.xlu0 %626
        %629 = vset.pattern.permute.xlu0 10
        %630 = vperm.xlu0 %629, %v338
        %v631 = vpop.permute.xlu0 %630
        %633 = vset.pattern.permute.xlu0 10
        %634 = vperm.xlu0 %633, %v339
        %v635 = vpop.permute.xlu0 %634
        %637 = vset.pattern.permute.xlu0 10
        %638 = vperm.xlu0 %637, %v340
        %v639 = vpop.permute.xlu0 %638
        %v641 = vlaneseq
        %v642 = vshrl.u32 %v641, 7
        %v643 = vsub.s32 2, %v642
        %v644 = vrot.slane %v334, %v643
        %v645 = vmul.f32 %v627, %v644
        %v646 = vmul.f32 %v631, %v644
        %v647 = vmul.f32 %v635, %v644
        %v648 = vmul.f32 %v639, %v644
        %v649 = vadd.f32 %v621, %v645
        %v650 = vadd.f32 %v622, %v646
        %v651 = vadd.f32 %v623, %v647
        %v652 = vadd.f32 %v624, %v648
        %653 = vset.pattern.permute.xlu0 11
        %654 = vperm.xlu0 %653, %v337
        %v655 = vpop.permute.xlu0 %654
        %657 = vset.pattern.permute.xlu0 11
        %658 = vperm.xlu0 %657, %v338
        %v659 = vpop.permute.xlu0 %658
        %661 = vset.pattern.permute.xlu0 11
        %662 = vperm.xlu0 %661, %v339
        %v663 = vpop.permute.xlu0 %662
        %665 = vset.pattern.permute.xlu0 11
        %666 = vperm.xlu0 %665, %v340
        %v667 = vpop.permute.xlu0 %666
        %v669 = vlaneseq
        %v670 = vshrl.u32 %v669, 7
        %v671 = vsub.s32 3, %v670
        %v672 = vrot.slane %v334, %v671
        %v673 = vmul.f32 %v655, %v672
        %v674 = vmul.f32 %v659, %v672
        %v675 = vmul.f32 %v663, %v672
        %v676 = vmul.f32 %v667, %v672
        %v677 = vadd.f32 %v649, %v673
        %v678 = vadd.f32 %v650, %v674
        %v679 = vadd.f32 %v651, %v675
        %v680 = vadd.f32 %v652, %v676
        %681 = vset.pattern.permute.xlu0 12
        %682 = vperm.xlu0 %681, %v337
        %v683 = vpop.permute.xlu0 %682
        %685 = vset.pattern.permute.xlu0 12
        %686 = vperm.xlu0 %685, %v338
        %v687 = vpop.permute.xlu0 %686
        %689 = vset.pattern.permute.xlu0 12
        %690 = vperm.xlu0 %689, %v339
        %v691 = vpop.permute.xlu0 %690
        %693 = vset.pattern.permute.xlu0 12
        %694 = vperm.xlu0 %693, %v340
        %v695 = vpop.permute.xlu0 %694
        %v697 = vlaneseq
        %v698 = vshrl.u32 %v697, 7
        %v699 = vsub.s32 4, %v698
        %v700 = vrot.slane %v334, %v699
        %v701 = vmul.f32 %v683, %v700
        %v702 = vmul.f32 %v687, %v700
        %v703 = vmul.f32 %v691, %v700
        %v704 = vmul.f32 %v695, %v700
        %v705 = vadd.f32 %v677, %v701
        %v706 = vadd.f32 %v678, %v702
        %v707 = vadd.f32 %v679, %v703
        %v708 = vadd.f32 %v680, %v704
        %709 = vset.pattern.permute.xlu0 13
        %710 = vperm.xlu0 %709, %v337
        %v711 = vpop.permute.xlu0 %710
        %713 = vset.pattern.permute.xlu0 13
        %714 = vperm.xlu0 %713, %v338
        %v715 = vpop.permute.xlu0 %714
        %717 = vset.pattern.permute.xlu0 13
        %718 = vperm.xlu0 %717, %v339
        %v719 = vpop.permute.xlu0 %718
        %721 = vset.pattern.permute.xlu0 13
        %722 = vperm.xlu0 %721, %v340
        %v723 = vpop.permute.xlu0 %722
        %v725 = vlaneseq
        %v726 = vshrl.u32 %v725, 7
        %v727 = vsub.s32 5, %v726
        %v728 = vrot.slane %v334, %v727
        %v729 = vmul.f32 %v711, %v728
        %v730 = vmul.f32 %v715, %v728
        %v731 = vmul.f32 %v719, %v728
        %v732 = vmul.f32 %v723, %v728
        %v733 = vadd.f32 %v705, %v729
        %v734 = vadd.f32 %v706, %v730
        %v735 = vadd.f32 %v707, %v731
        %v736 = vadd.f32 %v708, %v732
        %737 = vset.pattern.permute.xlu0 14
        %738 = vperm.xlu0 %737, %v337
        %v739 = vpop.permute.xlu0 %738
        %741 = vset.pattern.permute.xlu0 14
        %742 = vperm.xlu0 %741, %v338
        %v743 = vpop.permute.xlu0 %742
        %745 = vset.pattern.permute.xlu0 14
        %746 = vperm.xlu0 %745, %v339
        %v747 = vpop.permute.xlu0 %746
        %749 = vset.pattern.permute.xlu0 14
        %750 = vperm.xlu0 %749, %v340
        %v751 = vpop.permute.xlu0 %750
        %v753 = vlaneseq
        %v754 = vshrl.u32 %v753, 7
        %v755 = vsub.s32 6, %v754
        %v756 = vrot.slane %v334, %v755
        %v757 = vmul.f32 %v739, %v756
        %v758 = vmul.f32 %v743, %v756
        %v759 = vmul.f32 %v747, %v756
        %v760 = vmul.f32 %v751, %v756
        %v761 = vadd.f32 %v733, %v757
        %v762 = vadd.f32 %v734, %v758
        %v763 = vadd.f32 %v735, %v759
        %v764 = vadd.f32 %v736, %v760
        %765 = vset.pattern.permute.xlu0 15
        %766 = vperm.xlu0 %765, %v337
        %v767 = vpop.permute.xlu0 %766
        %769 = vset.pattern.permute.xlu0 15
        %770 = vperm.xlu0 %769, %v338
        %v771 = vpop.permute.xlu0 %770
        %773 = vset.pattern.permute.xlu0 15
        %774 = vperm.xlu0 %773, %v339
        %v775 = vpop.permute.xlu0 %774
        %777 = vset.pattern.permute.xlu0 15
        %778 = vperm.xlu0 %777, %v340
        %v779 = vpop.permute.xlu0 %778
        %v781 = vlaneseq
        %v782 = vshrl.u32 %v781, 7
        %v783 = vsub.s32 7, %v782
        %v784 = vrot.slane %v334, %v783
        %v785 = vmul.f32 %v767, %v784
        %v786 = vmul.f32 %v771, %v784
        %v787 = vmul.f32 %v775, %v784
        %v788 = vmul.f32 %v779, %v784
        %v789 = vadd.f32 %v761, %v785
        %v790 = vadd.f32 %v762, %v786
        %v791 = vadd.f32 %v763, %v787
        %v792 = vadd.f32 %v764, %v788
        %793 = vset.pattern.permute.xlu0 16
        %794 = vperm.xlu0 %793, %v337
        %v795 = vpop.permute.xlu0 %794
        %797 = vset.pattern.permute.xlu0 16
        %798 = vperm.xlu0 %797, %v338
        %v799 = vpop.permute.xlu0 %798
        %801 = vset.pattern.permute.xlu0 16
        %802 = vperm.xlu0 %801, %v339
        %v803 = vpop.permute.xlu0 %802
        %805 = vset.pattern.permute.xlu0 16
        %806 = vperm.xlu0 %805, %v340
        %v807 = vpop.permute.xlu0 %806
        %v809 = vlaneseq
        %v810 = vshrl.u32 %v809, 7
        %v811 = vsub.s32 0, %v810
        %v812 = vrot.slane %v335, %v811
        %v813 = vmul.f32 %v795, %v812
        %v814 = vmul.f32 %v799, %v812
        %v815 = vmul.f32 %v803, %v812
        %v816 = vmul.f32 %v807, %v812
        %v817 = vadd.f32 %v789, %v813
        %v818 = vadd.f32 %v790, %v814
        %v819 = vadd.f32 %v791, %v815
        %v820 = vadd.f32 %v792, %v816
        %821 = vset.pattern.permute.xlu0 17
        %822 = vperm.xlu0 %821, %v337
        %v823 = vpop.permute.xlu0 %822
        %825 = vset.pattern.permute.xlu0 17
        %826 = vperm.xlu0 %825, %v338
        %v827 = vpop.permute.xlu0 %826
        %829 = vset.pattern.permute.xlu0 17
        %830 = vperm.xlu0 %829, %v339
        %v831 = vpop.permute.xlu0 %830
        %833 = vset.pattern.permute.xlu0 17
        %834 = vperm.xlu0 %833, %v340
        %v835 = vpop.permute.xlu0 %834
        %v837 = vlaneseq
        %v838 = vshrl.u32 %v837, 7
        %v839 = vsub.s32 1, %v838
        %v840 = vrot.slane %v335, %v839
        %v841 = vmul.f32 %v823, %v840
        %v842 = vmul.f32 %v827, %v840
        %v843 = vmul.f32 %v831, %v840
        %v844 = vmul.f32 %v835, %v840
        %v845 = vadd.f32 %v817, %v841
        %v846 = vadd.f32 %v818, %v842
        %v847 = vadd.f32 %v819, %v843
        %v848 = vadd.f32 %v820, %v844
        %849 = vset.pattern.permute.xlu0 18
        %850 = vperm.xlu0 %849, %v337
        %v851 = vpop.permute.xlu0 %850
        %853 = vset.pattern.permute.xlu0 18
        %854 = vperm.xlu0 %853, %v338
        %v855 = vpop.permute.xlu0 %854
        %857 = vset.pattern.permute.xlu0 18
        %858 = vperm.xlu0 %857, %v339
        %v859 = vpop.permute.xlu0 %858
        %861 = vset.pattern.permute.xlu0 18
        %862 = vperm.xlu0 %861, %v340
        %v863 = vpop.permute.xlu0 %862
        %v865 = vlaneseq
        %v866 = vshrl.u32 %v865, 7
        %v867 = vsub.s32 2, %v866
        %v868 = vrot.slane %v335, %v867
        %v869 = vmul.f32 %v851, %v868
        %v870 = vmul.f32 %v855, %v868
        %v871 = vmul.f32 %v859, %v868
        %v872 = vmul.f32 %v863, %v868
        %v873 = vadd.f32 %v845, %v869
        %v874 = vadd.f32 %v846, %v870
        %v875 = vadd.f32 %v847, %v871
        %v876 = vadd.f32 %v848, %v872
        %877 = vset.pattern.permute.xlu0 19
        %878 = vperm.xlu0 %877, %v337
        %v879 = vpop.permute.xlu0 %878
        %881 = vset.pattern.permute.xlu0 19
        %882 = vperm.xlu0 %881, %v338
        %v883 = vpop.permute.xlu0 %882
        %885 = vset.pattern.permute.xlu0 19
        %886 = vperm.xlu0 %885, %v339
        %v887 = vpop.permute.xlu0 %886
        %889 = vset.pattern.permute.xlu0 19
        %890 = vperm.xlu0 %889, %v340
        %v891 = vpop.permute.xlu0 %890
        %v893 = vlaneseq
        %v894 = vshrl.u32 %v893, 7
        %v895 = vsub.s32 3, %v894
        %v896 = vrot.slane %v335, %v895
        %v897 = vmul.f32 %v879, %v896
        %v898 = vmul.f32 %v883, %v896
        %v899 = vmul.f32 %v887, %v896
        %v900 = vmul.f32 %v891, %v896
        %v901 = vadd.f32 %v873, %v897
        %v902 = vadd.f32 %v874, %v898
        %v903 = vadd.f32 %v875, %v899
        %v904 = vadd.f32 %v876, %v900
        %905 = vset.pattern.permute.xlu0 20
        %906 = vperm.xlu0 %905, %v337
        %v907 = vpop.permute.xlu0 %906
        %909 = vset.pattern.permute.xlu0 20
        %910 = vperm.xlu0 %909, %v338
        %v911 = vpop.permute.xlu0 %910
        %913 = vset.pattern.permute.xlu0 20
        %914 = vperm.xlu0 %913, %v339
        %v915 = vpop.permute.xlu0 %914
        %917 = vset.pattern.permute.xlu0 20
        %918 = vperm.xlu0 %917, %v340
        %v919 = vpop.permute.xlu0 %918
        %v921 = vlaneseq
        %v922 = vshrl.u32 %v921, 7
        %v923 = vsub.s32 4, %v922
        %v924 = vrot.slane %v335, %v923
        %v925 = vmul.f32 %v907, %v924
        %v926 = vmul.f32 %v911, %v924
        %v927 = vmul.f32 %v915, %v924
        %v928 = vmul.f32 %v919, %v924
        %v929 = vadd.f32 %v901, %v925
        %v930 = vadd.f32 %v902, %v926
        %v931 = vadd.f32 %v903, %v927
        %v932 = vadd.f32 %v904, %v928
        %933 = vset.pattern.permute.xlu0 21
        %934 = vperm.xlu0 %933, %v337
        %v935 = vpop.permute.xlu0 %934
        %937 = vset.pattern.permute.xlu0 21
        %938 = vperm.xlu0 %937, %v338
        %v939 = vpop.permute.xlu0 %938
        %941 = vset.pattern.permute.xlu0 21
        %942 = vperm.xlu0 %941, %v339
        %v943 = vpop.permute.xlu0 %942
        %945 = vset.pattern.permute.xlu0 21
        %946 = vperm.xlu0 %945, %v340
        %v947 = vpop.permute.xlu0 %946
        %v949 = vlaneseq
        %v950 = vshrl.u32 %v949, 7
        %v951 = vsub.s32 5, %v950
        %v952 = vrot.slane %v335, %v951
        %v953 = vmul.f32 %v935, %v952
        %v954 = vmul.f32 %v939, %v952
        %v955 = vmul.f32 %v943, %v952
        %v956 = vmul.f32 %v947, %v952
        %v957 = vadd.f32 %v929, %v953
        %v958 = vadd.f32 %v930, %v954
        %v959 = vadd.f32 %v931, %v955
        %v960 = vadd.f32 %v932, %v956
        %961 = vset.pattern.permute.xlu0 22
        %962 = vperm.xlu0 %961, %v337
        %v963 = vpop.permute.xlu0 %962
        %965 = vset.pattern.permute.xlu0 22
        %966 = vperm.xlu0 %965, %v338
        %v967 = vpop.permute.xlu0 %966
        %969 = vset.pattern.permute.xlu0 22
        %970 = vperm.xlu0 %969, %v339
        %v971 = vpop.permute.xlu0 %970
        %973 = vset.pattern.permute.xlu0 22
        %974 = vperm.xlu0 %973, %v340
        %v975 = vpop.permute.xlu0 %974
        %v977 = vlaneseq
        %v978 = vshrl.u32 %v977, 7
        %v979 = vsub.s32 6, %v978
        %v980 = vrot.slane %v335, %v979
        %v981 = vmul.f32 %v963, %v980
        %v982 = vmul.f32 %v967, %v980
        %v983 = vmul.f32 %v971, %v980
        %v984 = vmul.f32 %v975, %v980
        %v985 = vadd.f32 %v957, %v981
        %v986 = vadd.f32 %v958, %v982
        %v987 = vadd.f32 %v959, %v983
        %v988 = vadd.f32 %v960, %v984
        %989 = vset.pattern.permute.xlu0 23
        %990 = vperm.xlu0 %989, %v337
        %v991 = vpop.permute.xlu0 %990
        %993 = vset.pattern.permute.xlu0 23
        %994 = vperm.xlu0 %993, %v338
        %v995 = vpop.permute.xlu0 %994
        %997 = vset.pattern.permute.xlu0 23
        %998 = vperm.xlu0 %997, %v339
        %v999 = vpop.permute.xlu0 %998
        %1001 = vset.pattern.permute.xlu0 23
        %1002 = vperm.xlu0 %1001, %v340
        %v1003 = vpop.permute.xlu0 %1002
        %v1005 = vlaneseq
        %v1006 = vshrl.u32 %v1005, 7
        %v1007 = vsub.s32 7, %v1006
        %v1008 = vrot.slane %v335, %v1007
        %v1009 = vmul.f32 %v991, %v1008
        %v1010 = vmul.f32 %v995, %v1008
        %v1011 = vmul.f32 %v999, %v1008
        %v1012 = vmul.f32 %v1003, %v1008
        %v1013 = vadd.f32 %v985, %v1009
        %v1014 = vadd.f32 %v986, %v1010
        %v1015 = vadd.f32 %v987, %v1011
        %v1016 = vadd.f32 %v988, %v1012
        %1017 = vset.pattern.permute.xlu0 24
        %1018 = vperm.xlu0 %1017, %v337
        %v1019 = vpop.permute.xlu0 %1018
        %1021 = vset.pattern.permute.xlu0 24
        %1022 = vperm.xlu0 %1021, %v338
        %v1023 = vpop.permute.xlu0 %1022
        %1025 = vset.pattern.permute.xlu0 24
        %1026 = vperm.xlu0 %1025, %v339
        %v1027 = vpop.permute.xlu0 %1026
        %1029 = vset.pattern.permute.xlu0 24
        %1030 = vperm.xlu0 %1029, %v340
        %v1031 = vpop.permute.xlu0 %1030
        %v1033 = vlaneseq
        %v1034 = vshrl.u32 %v1033, 7
        %v1035 = vsub.s32 0, %v1034
        %v1036 = vrot.slane %v336, %v1035
        %v1037 = vmul.f32 %v1019, %v1036
        %v1038 = vmul.f32 %v1023, %v1036
        %v1039 = vmul.f32 %v1027, %v1036
        %v1040 = vmul.f32 %v1031, %v1036
        %v1041 = vadd.f32 %v1013, %v1037
        %v1042 = vadd.f32 %v1014, %v1038
        %v1043 = vadd.f32 %v1015, %v1039
        %v1044 = vadd.f32 %v1016, %v1040
        %1045 = vset.pattern.permute.xlu0 25
        %1046 = vperm.xlu0 %1045, %v337
        %v1047 = vpop.permute.xlu0 %1046
        %1049 = vset.pattern.permute.xlu0 25
        %1050 = vperm.xlu0 %1049, %v338
        %v1051 = vpop.permute.xlu0 %1050
        %1053 = vset.pattern.permute.xlu0 25
        %1054 = vperm.xlu0 %1053, %v339
        %v1055 = vpop.permute.xlu0 %1054
        %1057 = vset.pattern.permute.xlu0 25
        %1058 = vperm.xlu0 %1057, %v340
        %v1059 = vpop.permute.xlu0 %1058
        %v1061 = vlaneseq
        %v1062 = vshrl.u32 %v1061, 7
        %v1063 = vsub.s32 1, %v1062
        %v1064 = vrot.slane %v336, %v1063
        %v1065 = vmul.f32 %v1047, %v1064
        %v1066 = vmul.f32 %v1051, %v1064
        %v1067 = vmul.f32 %v1055, %v1064
        %v1068 = vmul.f32 %v1059, %v1064
        %v1069 = vadd.f32 %v1041, %v1065
        %v1070 = vadd.f32 %v1042, %v1066
        %v1071 = vadd.f32 %v1043, %v1067
        %v1072 = vadd.f32 %v1044, %v1068
        %1073 = vset.pattern.permute.xlu0 26
        %1074 = vperm.xlu0 %1073, %v337
        %v1075 = vpop.permute.xlu0 %1074
        %1077 = vset.pattern.permute.xlu0 26
        %1078 = vperm.xlu0 %1077, %v338
        %v1079 = vpop.permute.xlu0 %1078
        %1081 = vset.pattern.permute.xlu0 26
        %1082 = vperm.xlu0 %1081, %v339
        %v1083 = vpop.permute.xlu0 %1082
        %1085 = vset.pattern.permute.xlu0 26
        %1086 = vperm.xlu0 %1085, %v340
        %v1087 = vpop.permute.xlu0 %1086
        %v1089 = vlaneseq
        %v1090 = vshrl.u32 %v1089, 7
        %v1091 = vsub.s32 2, %v1090
        %v1092 = vrot.slane %v336, %v1091
        %v1093 = vmul.f32 %v1075, %v1092
        %v1094 = vmul.f32 %v1079, %v1092
        %v1095 = vmul.f32 %v1083, %v1092
        %v1096 = vmul.f32 %v1087, %v1092
        %v1097 = vadd.f32 %v1069, %v1093
        %v1098 = vadd.f32 %v1070, %v1094
        %v1099 = vadd.f32 %v1071, %v1095
        %v1100 = vadd.f32 %v1072, %v1096
        %1101 = vset.pattern.permute.xlu0 27
        %1102 = vperm.xlu0 %1101, %v337
        %v1103 = vpop.permute.xlu0 %1102
        %1105 = vset.pattern.permute.xlu0 27
        %1106 = vperm.xlu0 %1105, %v338
        %v1107 = vpop.permute.xlu0 %1106
        %1109 = vset.pattern.permute.xlu0 27
        %1110 = vperm.xlu0 %1109, %v339
        %v1111 = vpop.permute.xlu0 %1110
        %1113 = vset.pattern.permute.xlu0 27
        %1114 = vperm.xlu0 %1113, %v340
        %v1115 = vpop.permute.xlu0 %1114
        %v1117 = vlaneseq
        %v1118 = vshrl.u32 %v1117, 7
        %v1119 = vsub.s32 3, %v1118
        %v1120 = vrot.slane %v336, %v1119
        %v1121 = vmul.f32 %v1103, %v1120
        %v1122 = vmul.f32 %v1107, %v1120
        %v1123 = vmul.f32 %v1111, %v1120
        %v1124 = vmul.f32 %v1115, %v1120
        %v1125 = vadd.f32 %v1097, %v1121
        %v1126 = vadd.f32 %v1098, %v1122
        %v1127 = vadd.f32 %v1099, %v1123
        %v1128 = vadd.f32 %v1100, %v1124
        %1129 = vset.pattern.permute.xlu0 28
        %1130 = vperm.xlu0 %1129, %v337
        %v1131 = vpop.permute.xlu0 %1130
        %1133 = vset.pattern.permute.xlu0 28
        %1134 = vperm.xlu0 %1133, %v338
        %v1135 = vpop.permute.xlu0 %1134
        %1137 = vset.pattern.permute.xlu0 28
        %1138 = vperm.xlu0 %1137, %v339
        %v1139 = vpop.permute.xlu0 %1138
        %1141 = vset.pattern.permute.xlu0 28
        %1142 = vperm.xlu0 %1141, %v340
        %v1143 = vpop.permute.xlu0 %1142
        %v1145 = vlaneseq
        %v1146 = vshrl.u32 %v1145, 7
        %v1147 = vsub.s32 4, %v1146
        %v1148 = vrot.slane %v336, %v1147
        %v1149 = vmul.f32 %v1131, %v1148
        %v1150 = vmul.f32 %v1135, %v1148
        %v1151 = vmul.f32 %v1139, %v1148
        %v1152 = vmul.f32 %v1143, %v1148
        %v1153 = vadd.f32 %v1125, %v1149
        %v1154 = vadd.f32 %v1126, %v1150
        %v1155 = vadd.f32 %v1127, %v1151
        %v1156 = vadd.f32 %v1128, %v1152
        %1157 = vset.pattern.permute.xlu0 29
        %1158 = vperm.xlu0 %1157, %v337
        %v1159 = vpop.permute.xlu0 %1158
        %1161 = vset.pattern.permute.xlu0 29
        %1162 = vperm.xlu0 %1161, %v338
        %v1163 = vpop.permute.xlu0 %1162
        %1165 = vset.pattern.permute.xlu0 29
        %1166 = vperm.xlu0 %1165, %v339
        %v1167 = vpop.permute.xlu0 %1166
        %1169 = vset.pattern.permute.xlu0 29
        %1170 = vperm.xlu0 %1169, %v340
        %v1171 = vpop.permute.xlu0 %1170
        %v1173 = vlaneseq
        %v1174 = vshrl.u32 %v1173, 7
        %v1175 = vsub.s32 5, %v1174
        %v1176 = vrot.slane %v336, %v1175
        %v1177 = vmul.f32 %v1159, %v1176
        %v1178 = vmul.f32 %v1163, %v1176
        %v1179 = vmul.f32 %v1167, %v1176
        %v1180 = vmul.f32 %v1171, %v1176
        %v1181 = vadd.f32 %v1153, %v1177
        %v1182 = vadd.f32 %v1154, %v1178
        %v1183 = vadd.f32 %v1155, %v1179
        %v1184 = vadd.f32 %v1156, %v1180
        %1185 = vset.pattern.permute.xlu0 30
        %1186 = vperm.xlu0 %1185, %v337
        %v1187 = vpop.permute.xlu0 %1186
        %1189 = vset.pattern.permute.xlu0 30
        %1190 = vperm.xlu0 %1189, %v338
        %v1191 = vpop.permute.xlu0 %1190
        %1193 = vset.pattern.permute.xlu0 30
        %1194 = vperm.xlu0 %1193, %v339
        %v1195 = vpop.permute.xlu0 %1194
        %1197 = vset.pattern.permute.xlu0 30
        %1198 = vperm.xlu0 %1197, %v340
        %v1199 = vpop.permute.xlu0 %1198
        %v1201 = vlaneseq
        %v1202 = vshrl.u32 %v1201, 7
        %v1203 = vsub.s32 6, %v1202
        %v1204 = vrot.slane %v336, %v1203
        %v1205 = vmul.f32 %v1187, %v1204
        %v1206 = vmul.f32 %v1191, %v1204
        %v1207 = vmul.f32 %v1195, %v1204
        %v1208 = vmul.f32 %v1199, %v1204
        %v1209 = vadd.f32 %v1181, %v1205
        %v1210 = vadd.f32 %v1182, %v1206
        %v1211 = vadd.f32 %v1183, %v1207
        %v1212 = vadd.f32 %v1184, %v1208
        %1213 = vset.pattern.permute.xlu0 31
        %1214 = vperm.xlu0 %1213, %v337
        %v1215 = vpop.permute.xlu0 %1214
        %1217 = vset.pattern.permute.xlu0 31
        %1218 = vperm.xlu0 %1217, %v338
        %v1219 = vpop.permute.xlu0 %1218
        %1221 = vset.pattern.permute.xlu0 31
        %1222 = vperm.xlu0 %1221, %v339
        %v1223 = vpop.permute.xlu0 %1222
        %1225 = vset.pattern.permute.xlu0 31
        %1226 = vperm.xlu0 %1225, %v340
        %v1227 = vpop.permute.xlu0 %1226
        %v1229 = vlaneseq
        %v1230 = vshrl.u32 %v1229, 7
        %v1231 = vsub.s32 7, %v1230
        %v1232 = vrot.slane %v336, %v1231
        %v1233 = vmul.f32 %v1215, %v1232
        %v1234 = vmul.f32 %v1219, %v1232
        %v1235 = vmul.f32 %v1223, %v1232
        %v1236 = vmul.f32 %v1227, %v1232
        %v1237 = vadd.f32 %v1209, %v1233
        %v1238 = vadd.f32 %v1210, %v1234
        %v1239 = vadd.f32 %v1211, %v1235
        %v1240 = vadd.f32 %v1212, %v1236
        %1242 = vset.pattern.permute.xlu0 0
        %1243 = vperm.xlu0 %1242, %v341
        %v1244 = vpop.permute.xlu0 %1243
        %1247 = vset.pattern.permute.xlu0 0
        %1248 = vperm.xlu0 %1247, %v342
        %v1249 = vpop.permute.xlu0 %1248
        %1252 = vset.pattern.permute.xlu0 0
        %1253 = vperm.xlu0 %1252, %v343
        %v1254 = vpop.permute.xlu0 %1253
        %1257 = vset.pattern.permute.xlu0 0
        %1258 = vperm.xlu0 %1257, %v344
        %v1259 = vpop.permute.xlu0 %1258
        %v1261 = vadd.f32 %v1237, %v1244
        %v1262 = vadd.f32 %v1238, %v1249
        %v1263 = vadd.f32 %v1239, %v1254
        %v1264 = vadd.f32 %v1240, %v1259
        %v1265 = vmax.f32 %v1261, 0.0
        %v1266 = vmax.f32 %v1262, 0.0
        %v1267 = vmax.f32 %v1263, 0.0
        %v1268 = vmax.f32 %v1264, 0.0
        %s1269 = scalar_lea.vmem %s2, 32
        %v1270 = vld [vmem:[%s1269] sm:$0xff]
        %v1271 = vld [vmem:[%s1269 + $0x8] sm:$0xff]
        %v1272 = vld [vmem:[%s1269 + $0x10] sm:$0xff]
        %v1273 = vld [vmem:[%s1269 + $0x18] sm:$0xff]
        %s1274 = scalar_lea.vmem %s3, 32
        %v1275 = vld [vmem:[%s1274] sm:$0xff]
        %v1276 = vld [vmem:[%s1274 + $0x8] sm:$0xff]
        %v1277 = vld [vmem:[%s1274 + $0x10] sm:$0xff]
        %v1278 = vld [vmem:[%s1274 + $0x18] sm:$0xff]
        %1280 = vset.pattern.permute.xlu0 0
        %1281 = vperm.xlu0 %1280, %v1270
        %v1282 = vpop.permute.xlu0 %1281
        %1285 = vset.pattern.permute.xlu0 0
        %1286 = vperm.xlu0 %1285, %v1271
        %v1287 = vpop.permute.xlu0 %1286
        %1290 = vset.pattern.permute.xlu0 0
        %1291 = vperm.xlu0 %1290, %v1272
        %v1292 = vpop.permute.xlu0 %1291
        %1295 = vset.pattern.permute.xlu0 0
        %1296 = vperm.xlu0 %1295, %v1273
        %v1297 = vpop.permute.xlu0 %1296
        %v1299 = vlaneseq
        %v1300 = vshrl.u32 %v1299, 7
        %v1301 = vsub.s32 0, %v1300
        %v1302 = vrot.slane %v1265, %v1301
        %v1303 = vmul.f32 %v1282, %v1302
        %v1304 = vmul.f32 %v1287, %v1302
        %v1305 = vmul.f32 %v1292, %v1302
        %v1306 = vmul.f32 %v1297, %v1302
        %1307 = vset.pattern.permute.xlu0 1
        %1308 = vperm.xlu0 %1307, %v1270
        %v1309 = vpop.permute.xlu0 %1308
        %1311 = vset.pattern.permute.xlu0 1
        %1312 = vperm.xlu0 %1311, %v1271
        %v1313 = vpop.permute.xlu0 %1312
        %1315 = vset.pattern.permute.xlu0 1
        %1316 = vperm.xlu0 %1315, %v1272
        %v1317 = vpop.permute.xlu0 %1316
        %1319 = vset.pattern.permute.xlu0 1
        %1320 = vperm.xlu0 %1319, %v1273
        %v1321 = vpop.permute.xlu0 %1320
        %v1323 = vlaneseq
        %v1324 = vshrl.u32 %v1323, 7
        %v1325 = vsub.s32 1, %v1324
        %v1326 = vrot.slane %v1265, %v1325
        %v1327 = vmul.f32 %v1309, %v1326
        %v1328 = vmul.f32 %v1313, %v1326
        %v1329 = vmul.f32 %v1317, %v1326
        %v1330 = vmul.f32 %v1321, %v1326
        %v1331 = vadd.f32 %v1303, %v1327
        %v1332 = vadd.f32 %v1304, %v1328
        %v1333 = vadd.f32 %v1305, %v1329
        %v1334 = vadd.f32 %v1306, %v1330
        %1335 = vset.pattern.permute.xlu0 2
        %1336 = vperm.xlu0 %1335, %v1270
        %v1337 = vpop.permute.xlu0 %1336
        %1339 = vset.pattern.permute.xlu0 2
        %1340 = vperm.xlu0 %1339, %v1271
        %v1341 = vpop.permute.xlu0 %1340
        %1343 = vset.pattern.permute.xlu0 2
        %1344 = vperm.xlu0 %1343, %v1272
        %v1345 = vpop.permute.xlu0 %1344
        %1347 = vset.pattern.permute.xlu0 2
        %1348 = vperm.xlu0 %1347, %v1273
        %v1349 = vpop.permute.xlu0 %1348
        %v1351 = vlaneseq
        %v1352 = vshrl.u32 %v1351, 7
        %v1353 = vsub.s32 2, %v1352
        %v1354 = vrot.slane %v1265, %v1353
        %v1355 = vmul.f32 %v1337, %v1354
        %v1356 = vmul.f32 %v1341, %v1354
        %v1357 = vmul.f32 %v1345, %v1354
        %v1358 = vmul.f32 %v1349, %v1354
        %v1359 = vadd.f32 %v1331, %v1355
        %v1360 = vadd.f32 %v1332, %v1356
        %v1361 = vadd.f32 %v1333, %v1357
        %v1362 = vadd.f32 %v1334, %v1358
        %1363 = vset.pattern.permute.xlu0 3
        %1364 = vperm.xlu0 %1363, %v1270
        %v1365 = vpop.permute.xlu0 %1364
        %1367 = vset.pattern.permute.xlu0 3
        %1368 = vperm.xlu0 %1367, %v1271
        %v1369 = vpop.permute.xlu0 %1368
        %1371 = vset.pattern.permute.xlu0 3
        %1372 = vperm.xlu0 %1371, %v1272
        %v1373 = vpop.permute.xlu0 %1372
        %1375 = vset.pattern.permute.xlu0 3
        %1376 = vperm.xlu0 %1375, %v1273
        %v1377 = vpop.permute.xlu0 %1376
        %v1379 = vlaneseq
        %v1380 = vshrl.u32 %v1379, 7
        %v1381 = vsub.s32 3, %v1380
        %v1382 = vrot.slane %v1265, %v1381
        %v1383 = vmul.f32 %v1365, %v1382
        %v1384 = vmul.f32 %v1369, %v1382
        %v1385 = vmul.f32 %v1373, %v1382
        %v1386 = vmul.f32 %v1377, %v1382
        %v1387 = vadd.f32 %v1359, %v1383
        %v1388 = vadd.f32 %v1360, %v1384
        %v1389 = vadd.f32 %v1361, %v1385
        %v1390 = vadd.f32 %v1362, %v1386
        %1391 = vset.pattern.permute.xlu0 4
        %1392 = vperm.xlu0 %1391, %v1270
        %v1393 = vpop.permute.xlu0 %1392
        %1395 = vset.pattern.permute.xlu0 4
        %1396 = vperm.xlu0 %1395, %v1271
        %v1397 = vpop.permute.xlu0 %1396
        %1399 = vset.pattern.permute.xlu0 4
        %1400 = vperm.xlu0 %1399, %v1272
        %v1401 = vpop.permute.xlu0 %1400
        %1403 = vset.pattern.permute.xlu0 4
        %1404 = vperm.xlu0 %1403, %v1273
        %v1405 = vpop.permute.xlu0 %1404
        %v1407 = vlaneseq
        %v1408 = vshrl.u32 %v1407, 7
        %v1409 = vsub.s32 4, %v1408
        %v1410 = vrot.slane %v1265, %v1409
        %v1411 = vmul.f32 %v1393, %v1410
        %v1412 = vmul.f32 %v1397, %v1410
        %v1413 = vmul.f32 %v1401, %v1410
        %v1414 = vmul.f32 %v1405, %v1410
        %v1415 = vadd.f32 %v1387, %v1411
        %v1416 = vadd.f32 %v1388, %v1412
        %v1417 = vadd.f32 %v1389, %v1413
        %v1418 = vadd.f32 %v1390, %v1414
        %1419 = vset.pattern.permute.xlu0 5
        %1420 = vperm.xlu0 %1419, %v1270
        %v1421 = vpop.permute.xlu0 %1420
        %1423 = vset.pattern.permute.xlu0 5
        %1424 = vperm.xlu0 %1423, %v1271
        %v1425 = vpop.permute.xlu0 %1424
        %1427 = vset.pattern.permute.xlu0 5
        %1428 = vperm.xlu0 %1427, %v1272
        %v1429 = vpop.permute.xlu0 %1428
        %1431 = vset.pattern.permute.xlu0 5
        %1432 = vperm.xlu0 %1431, %v1273
        %v1433 = vpop.permute.xlu0 %1432
        %v1435 = vlaneseq
        %v1436 = vshrl.u32 %v1435, 7
        %v1437 = vsub.s32 5, %v1436
        %v1438 = vrot.slane %v1265, %v1437
        %v1439 = vmul.f32 %v1421, %v1438
        %v1440 = vmul.f32 %v1425, %v1438
        %v1441 = vmul.f32 %v1429, %v1438
        %v1442 = vmul.f32 %v1433, %v1438
        %v1443 = vadd.f32 %v1415, %v1439
        %v1444 = vadd.f32 %v1416, %v1440
        %v1445 = vadd.f32 %v1417, %v1441
        %v1446 = vadd.f32 %v1418, %v1442
        %1447 = vset.pattern.permute.xlu0 6
        %1448 = vperm.xlu0 %1447, %v1270
        %v1449 = vpop.permute.xlu0 %1448
        %1451 = vset.pattern.permute.xlu0 6
        %1452 = vperm.xlu0 %1451, %v1271
        %v1453 = vpop.permute.xlu0 %1452
        %1455 = vset.pattern.permute.xlu0 6
        %1456 = vperm.xlu0 %1455, %v1272
        %v1457 = vpop.permute.xlu0 %1456
        %1459 = vset.pattern.permute.xlu0 6
        %1460 = vperm.xlu0 %1459, %v1273
        %v1461 = vpop.permute.xlu0 %1460
        %v1463 = vlaneseq
        %v1464 = vshrl.u32 %v1463, 7
        %v1465 = vsub.s32 6, %v1464
        %v1466 = vrot.slane %v1265, %v1465
        %v1467 = vmul.f32 %v1449, %v1466
        %v1468 = vmul.f32 %v1453, %v1466
        %v1469 = vmul.f32 %v1457, %v1466
        %v1470 = vmul.f32 %v1461, %v1466
        %v1471 = vadd.f32 %v1443, %v1467
        %v1472 = vadd.f32 %v1444, %v1468
        %v1473 = vadd.f32 %v1445, %v1469
        %v1474 = vadd.f32 %v1446, %v1470
        %1475 = vset.pattern.permute.xlu0 7
        %1476 = vperm.xlu0 %1475, %v1270
        %v1477 = vpop.permute.xlu0 %1476
        %1479 = vset.pattern.permute.xlu0 7
        %1480 = vperm.xlu0 %1479, %v1271
        %v1481 = vpop.permute.xlu0 %1480
        %1483 = vset.pattern.permute.xlu0 7
        %1484 = vperm.xlu0 %1483, %v1272
        %v1485 = vpop.permute.xlu0 %1484
        %1487 = vset.pattern.permute.xlu0 7
        %1488 = vperm.xlu0 %1487, %v1273
        %v1489 = vpop.permute.xlu0 %1488
        %v1491 = vlaneseq
        %v1492 = vshrl.u32 %v1491, 7
        %v1493 = vsub.s32 7, %v1492
        %v1494 = vrot.slane %v1265, %v1493
        %v1495 = vmul.f32 %v1477, %v1494
        %v1496 = vmul.f32 %v1481, %v1494
        %v1497 = vmul.f32 %v1485, %v1494
        %v1498 = vmul.f32 %v1489, %v1494
        %v1499 = vadd.f32 %v1471, %v1495
        %v1500 = vadd.f32 %v1472, %v1496
        %v1501 = vadd.f32 %v1473, %v1497
        %v1502 = vadd.f32 %v1474, %v1498
        %1503 = vset.pattern.permute.xlu0 8
        %1504 = vperm.xlu0 %1503, %v1270
        %v1505 = vpop.permute.xlu0 %1504
        %1507 = vset.pattern.permute.xlu0 8
        %1508 = vperm.xlu0 %1507, %v1271
        %v1509 = vpop.permute.xlu0 %1508
        %1511 = vset.pattern.permute.xlu0 8
        %1512 = vperm.xlu0 %1511, %v1272
        %v1513 = vpop.permute.xlu0 %1512
        %1515 = vset.pattern.permute.xlu0 8
        %1516 = vperm.xlu0 %1515, %v1273
        %v1517 = vpop.permute.xlu0 %1516
        %v1519 = vlaneseq
        %v1520 = vshrl.u32 %v1519, 7
        %v1521 = vsub.s32 0, %v1520
        %v1522 = vrot.slane %v1266, %v1521
        %v1523 = vmul.f32 %v1505, %v1522
        %v1524 = vmul.f32 %v1509, %v1522
        %v1525 = vmul.f32 %v1513, %v1522
        %v1526 = vmul.f32 %v1517, %v1522
        %v1527 = vadd.f32 %v1499, %v1523
        %v1528 = vadd.f32 %v1500, %v1524
        %v1529 = vadd.f32 %v1501, %v1525
        %v1530 = vadd.f32 %v1502, %v1526
        %1531 = vset.pattern.permute.xlu0 9
        %1532 = vperm.xlu0 %1531, %v1270
        %v1533 = vpop.permute.xlu0 %1532
        %1535 = vset.pattern.permute.xlu0 9
        %1536 = vperm.xlu0 %1535, %v1271
        %v1537 = vpop.permute.xlu0 %1536
        %1539 = vset.pattern.permute.xlu0 9
        %1540 = vperm.xlu0 %1539, %v1272
        %v1541 = vpop.permute.xlu0 %1540
        %1543 = vset.pattern.permute.xlu0 9
        %1544 = vperm.xlu0 %1543, %v1273
        %v1545 = vpop.permute.xlu0 %1544
        %v1547 = vlaneseq
        %v1548 = vshrl.u32 %v1547, 7
        %v1549 = vsub.s32 1, %v1548
        %v1550 = vrot.slane %v1266, %v1549
        %v1551 = vmul.f32 %v1533, %v1550
        %v1552 = vmul.f32 %v1537, %v1550
        %v1553 = vmul.f32 %v1541, %v1550
        %v1554 = vmul.f32 %v1545, %v1550
        %v1555 = vadd.f32 %v1527, %v1551
        %v1556 = vadd.f32 %v1528, %v1552
        %v1557 = vadd.f32 %v1529, %v1553
        %v1558 = vadd.f32 %v1530, %v1554
        %1559 = vset.pattern.permute.xlu0 10
        %1560 = vperm.xlu0 %1559, %v1270
        %v1561 = vpop.permute.xlu0 %1560
        %1563 = vset.pattern.permute.xlu0 10
        %1564 = vperm.xlu0 %1563, %v1271
        %v1565 = vpop.permute.xlu0 %1564
        %1567 = vset.pattern.permute.xlu0 10
        %1568 = vperm.xlu0 %1567, %v1272
        %v1569 = vpop.permute.xlu0 %1568
        %1571 = vset.pattern.permute.xlu0 10
        %1572 = vperm.xlu0 %1571, %v1273
        %v1573 = vpop.permute.xlu0 %1572
        %v1575 = vlaneseq
        %v1576 = vshrl.u32 %v1575, 7
        %v1577 = vsub.s32 2, %v1576
        %v1578 = vrot.slane %v1266, %v1577
        %v1579 = vmul.f32 %v1561, %v1578
        %v1580 = vmul.f32 %v1565, %v1578
        %v1581 = vmul.f32 %v1569, %v1578
        %v1582 = vmul.f32 %v1573, %v1578
        %v1583 = vadd.f32 %v1555, %v1579
        %v1584 = vadd.f32 %v1556, %v1580
        %v1585 = vadd.f32 %v1557, %v1581
        %v1586 = vadd.f32 %v1558, %v1582
        %1587 = vset.pattern.permute.xlu0 11
        %1588 = vperm.xlu0 %1587, %v1270
        %v1589 = vpop.permute.xlu0 %1588
        %1591 = vset.pattern.permute.xlu0 11
        %1592 = vperm.xlu0 %1591, %v1271
        %v1593 = vpop.permute.xlu0 %1592
        %1595 = vset.pattern.permute.xlu0 11
        %1596 = vperm.xlu0 %1595, %v1272
        %v1597 = vpop.permute.xlu0 %1596
        %1599 = vset.pattern.permute.xlu0 11
        %1600 = vperm.xlu0 %1599, %v1273
        %v1601 = vpop.permute.xlu0 %1600
        %v1603 = vlaneseq
        %v1604 = vshrl.u32 %v1603, 7
        %v1605 = vsub.s32 3, %v1604
        %v1606 = vrot.slane %v1266, %v1605
        %v1607 = vmul.f32 %v1589, %v1606
        %v1608 = vmul.f32 %v1593, %v1606
        %v1609 = vmul.f32 %v1597, %v1606
        %v1610 = vmul.f32 %v1601, %v1606
        %v1611 = vadd.f32 %v1583, %v1607
        %v1612 = vadd.f32 %v1584, %v1608
        %v1613 = vadd.f32 %v1585, %v1609
        %v1614 = vadd.f32 %v1586, %v1610
        %1615 = vset.pattern.permute.xlu0 12
        %1616 = vperm.xlu0 %1615, %v1270
        %v1617 = vpop.permute.xlu0 %1616
        %1619 = vset.pattern.permute.xlu0 12
        %1620 = vperm.xlu0 %1619, %v1271
        %v1621 = vpop.permute.xlu0 %1620
        %1623 = vset.pattern.permute.xlu0 12
        %1624 = vperm.xlu0 %1623, %v1272
        %v1625 = vpop.permute.xlu0 %1624
        %1627 = vset.pattern.permute.xlu0 12
        %1628 = vperm.xlu0 %1627, %v1273
        %v1629 = vpop.permute.xlu0 %1628
        %v1631 = vlaneseq
        %v1632 = vshrl.u32 %v1631, 7
        %v1633 = vsub.s32 4, %v1632
        %v1634 = vrot.slane %v1266, %v1633
        %v1635 = vmul.f32 %v1617, %v1634
        %v1636 = vmul.f32 %v1621, %v1634
        %v1637 = vmul.f32 %v1625, %v1634
        %v1638 = vmul.f32 %v1629, %v1634
        %v1639 = vadd.f32 %v1611, %v1635
        %v1640 = vadd.f32 %v1612, %v1636
        %v1641 = vadd.f32 %v1613, %v1637
        %v1642 = vadd.f32 %v1614, %v1638
        %1643 = vset.pattern.permute.xlu0 13
        %1644 = vperm.xlu0 %1643, %v1270
        %v1645 = vpop.permute.xlu0 %1644
        %1647 = vset.pattern.permute.xlu0 13
        %1648 = vperm.xlu0 %1647, %v1271
        %v1649 = vpop.permute.xlu0 %1648
        %1651 = vset.pattern.permute.xlu0 13
        %1652 = vperm.xlu0 %1651, %v1272
        %v1653 = vpop.permute.xlu0 %1652
        %1655 = vset.pattern.permute.xlu0 13
        %1656 = vperm.xlu0 %1655, %v1273
        %v1657 = vpop.permute.xlu0 %1656
        %v1659 = vlaneseq
        %v1660 = vshrl.u32 %v1659, 7
        %v1661 = vsub.s32 5, %v1660
        %v1662 = vrot.slane %v1266, %v1661
        %v1663 = vmul.f32 %v1645, %v1662
        %v1664 = vmul.f32 %v1649, %v1662
        %v1665 = vmul.f32 %v1653, %v1662
        %v1666 = vmul.f32 %v1657, %v1662
        %v1667 = vadd.f32 %v1639, %v1663
        %v1668 = vadd.f32 %v1640, %v1664
        %v1669 = vadd.f32 %v1641, %v1665
        %v1670 = vadd.f32 %v1642, %v1666
        %1671 = vset.pattern.permute.xlu0 14
        %1672 = vperm.xlu0 %1671, %v1270
        %v1673 = vpop.permute.xlu0 %1672
        %1675 = vset.pattern.permute.xlu0 14
        %1676 = vperm.xlu0 %1675, %v1271
        %v1677 = vpop.permute.xlu0 %1676
        %1679 = vset.pattern.permute.xlu0 14
        %1680 = vperm.xlu0 %1679, %v1272
        %v1681 = vpop.permute.xlu0 %1680
        %1683 = vset.pattern.permute.xlu0 14
        %1684 = vperm.xlu0 %1683, %v1273
        %v1685 = vpop.permute.xlu0 %1684
        %v1687 = vlaneseq
        %v1688 = vshrl.u32 %v1687, 7
        %v1689 = vsub.s32 6, %v1688
        %v1690 = vrot.slane %v1266, %v1689
        %v1691 = vmul.f32 %v1673, %v1690
        %v1692 = vmul.f32 %v1677, %v1690
        %v1693 = vmul.f32 %v1681, %v1690
        %v1694 = vmul.f32 %v1685, %v1690
        %v1695 = vadd.f32 %v1667, %v1691
        %v1696 = vadd.f32 %v1668, %v1692
        %v1697 = vadd.f32 %v1669, %v1693
        %v1698 = vadd.f32 %v1670, %v1694
        %1699 = vset.pattern.permute.xlu0 15
        %1700 = vperm.xlu0 %1699, %v1270
        %v1701 = vpop.permute.xlu0 %1700
        %1703 = vset.pattern.permute.xlu0 15
        %1704 = vperm.xlu0 %1703, %v1271
        %v1705 = vpop.permute.xlu0 %1704
        %1707 = vset.pattern.permute.xlu0 15
        %1708 = vperm.xlu0 %1707, %v1272
        %v1709 = vpop.permute.xlu0 %1708
        %1711 = vset.pattern.permute.xlu0 15
        %1712 = vperm.xlu0 %1711, %v1273
        %v1713 = vpop.permute.xlu0 %1712
        %v1715 = vlaneseq
        %v1716 = vshrl.u32 %v1715, 7
        %v1717 = vsub.s32 7, %v1716
        %v1718 = vrot.slane %v1266, %v1717
        %v1719 = vmul.f32 %v1701, %v1718
        %v1720 = vmul.f32 %v1705, %v1718
        %v1721 = vmul.f32 %v1709, %v1718
        %v1722 = vmul.f32 %v1713, %v1718
        %v1723 = vadd.f32 %v1695, %v1719
        %v1724 = vadd.f32 %v1696, %v1720
        %v1725 = vadd.f32 %v1697, %v1721
        %v1726 = vadd.f32 %v1698, %v1722
        %1727 = vset.pattern.permute.xlu0 16
        %1728 = vperm.xlu0 %1727, %v1270
        %v1729 = vpop.permute.xlu0 %1728
        %1731 = vset.pattern.permute.xlu0 16
        %1732 = vperm.xlu0 %1731, %v1271
        %v1733 = vpop.permute.xlu0 %1732
        %1735 = vset.pattern.permute.xlu0 16
        %1736 = vperm.xlu0 %1735, %v1272
        %v1737 = vpop.permute.xlu0 %1736
        %1739 = vset.pattern.permute.xlu0 16
        %1740 = vperm.xlu0 %1739, %v1273
        %v1741 = vpop.permute.xlu0 %1740
        %v1743 = vlaneseq
        %v1744 = vshrl.u32 %v1743, 7
        %v1745 = vsub.s32 0, %v1744
        %v1746 = vrot.slane %v1267, %v1745
        %v1747 = vmul.f32 %v1729, %v1746
        %v1748 = vmul.f32 %v1733, %v1746
        %v1749 = vmul.f32 %v1737, %v1746
        %v1750 = vmul.f32 %v1741, %v1746
        %v1751 = vadd.f32 %v1723, %v1747
        %v1752 = vadd.f32 %v1724, %v1748
        %v1753 = vadd.f32 %v1725, %v1749
        %v1754 = vadd.f32 %v1726, %v1750
        %1755 = vset.pattern.permute.xlu0 17
        %1756 = vperm.xlu0 %1755, %v1270
        %v1757 = vpop.permute.xlu0 %1756
        %1759 = vset.pattern.permute.xlu0 17
        %1760 = vperm.xlu0 %1759, %v1271
        %v1761 = vpop.permute.xlu0 %1760
        %1763 = vset.pattern.permute.xlu0 17
        %1764 = vperm.xlu0 %1763, %v1272
        %v1765 = vpop.permute.xlu0 %1764
        %1767 = vset.pattern.permute.xlu0 17
        %1768 = vperm.xlu0 %1767, %v1273
        %v1769 = vpop.permute.xlu0 %1768
        %v1771 = vlaneseq
        %v1772 = vshrl.u32 %v1771, 7
        %v1773 = vsub.s32 1, %v1772
        %v1774 = vrot.slane %v1267, %v1773
        %v1775 = vmul.f32 %v1757, %v1774
        %v1776 = vmul.f32 %v1761, %v1774
        %v1777 = vmul.f32 %v1765, %v1774
        %v1778 = vmul.f32 %v1769, %v1774
        %v1779 = vadd.f32 %v1751, %v1775
        %v1780 = vadd.f32 %v1752, %v1776
        %v1781 = vadd.f32 %v1753, %v1777
        %v1782 = vadd.f32 %v1754, %v1778
        %1783 = vset.pattern.permute.xlu0 18
        %1784 = vperm.xlu0 %1783, %v1270
        %v1785 = vpop.permute.xlu0 %1784
        %1787 = vset.pattern.permute.xlu0 18
        %1788 = vperm.xlu0 %1787, %v1271
        %v1789 = vpop.permute.xlu0 %1788
        %1791 = vset.pattern.permute.xlu0 18
        %1792 = vperm.xlu0 %1791, %v1272
        %v1793 = vpop.permute.xlu0 %1792
        %1795 = vset.pattern.permute.xlu0 18
        %1796 = vperm.xlu0 %1795, %v1273
        %v1797 = vpop.permute.xlu0 %1796
        %v1799 = vlaneseq
        %v1800 = vshrl.u32 %v1799, 7
        %v1801 = vsub.s32 2, %v1800
        %v1802 = vrot.slane %v1267, %v1801
        %v1803 = vmul.f32 %v1785, %v1802
        %v1804 = vmul.f32 %v1789, %v1802
        %v1805 = vmul.f32 %v1793, %v1802
        %v1806 = vmul.f32 %v1797, %v1802
        %v1807 = vadd.f32 %v1779, %v1803
        %v1808 = vadd.f32 %v1780, %v1804
        %v1809 = vadd.f32 %v1781, %v1805
        %v1810 = vadd.f32 %v1782, %v1806
        %1811 = vset.pattern.permute.xlu0 19
        %1812 = vperm.xlu0 %1811, %v1270
        %v1813 = vpop.permute.xlu0 %1812
        %1815 = vset.pattern.permute.xlu0 19
        %1816 = vperm.xlu0 %1815, %v1271
        %v1817 = vpop.permute.xlu0 %1816
        %1819 = vset.pattern.permute.xlu0 19
        %1820 = vperm.xlu0 %1819, %v1272
        %v1821 = vpop.permute.xlu0 %1820
        %1823 = vset.pattern.permute.xlu0 19
        %1824 = vperm.xlu0 %1823, %v1273
        %v1825 = vpop.permute.xlu0 %1824
        %v1827 = vlaneseq
        %v1828 = vshrl.u32 %v1827, 7
        %v1829 = vsub.s32 3, %v1828
        %v1830 = vrot.slane %v1267, %v1829
        %v1831 = vmul.f32 %v1813, %v1830
        %v1832 = vmul.f32 %v1817, %v1830
        %v1833 = vmul.f32 %v1821, %v1830
        %v1834 = vmul.f32 %v1825, %v1830
        %v1835 = vadd.f32 %v1807, %v1831
        %v1836 = vadd.f32 %v1808, %v1832
        %v1837 = vadd.f32 %v1809, %v1833
        %v1838 = vadd.f32 %v1810, %v1834
        %1839 = vset.pattern.permute.xlu0 20
        %1840 = vperm.xlu0 %1839, %v1270
        %v1841 = vpop.permute.xlu0 %1840
        %1843 = vset.pattern.permute.xlu0 20
        %1844 = vperm.xlu0 %1843, %v1271
        %v1845 = vpop.permute.xlu0 %1844
        %1847 = vset.pattern.permute.xlu0 20
        %1848 = vperm.xlu0 %1847, %v1272
        %v1849 = vpop.permute.xlu0 %1848
        %1851 = vset.pattern.permute.xlu0 20
        %1852 = vperm.xlu0 %1851, %v1273
        %v1853 = vpop.permute.xlu0 %1852
        %v1855 = vlaneseq
        %v1856 = vshrl.u32 %v1855, 7
        %v1857 = vsub.s32 4, %v1856
        %v1858 = vrot.slane %v1267, %v1857
        %v1859 = vmul.f32 %v1841, %v1858
        %v1860 = vmul.f32 %v1845, %v1858
        %v1861 = vmul.f32 %v1849, %v1858
        %v1862 = vmul.f32 %v1853, %v1858
        %v1863 = vadd.f32 %v1835, %v1859
        %v1864 = vadd.f32 %v1836, %v1860
        %v1865 = vadd.f32 %v1837, %v1861
        %v1866 = vadd.f32 %v1838, %v1862
        %1867 = vset.pattern.permute.xlu0 21
        %1868 = vperm.xlu0 %1867, %v1270
        %v1869 = vpop.permute.xlu0 %1868
        %1871 = vset.pattern.permute.xlu0 21
        %1872 = vperm.xlu0 %1871, %v1271
        %v1873 = vpop.permute.xlu0 %1872
        %1875 = vset.pattern.permute.xlu0 21
        %1876 = vperm.xlu0 %1875, %v1272
        %v1877 = vpop.permute.xlu0 %1876
        %1879 = vset.pattern.permute.xlu0 21
        %1880 = vperm.xlu0 %1879, %v1273
        %v1881 = vpop.permute.xlu0 %1880
        %v1883 = vlaneseq
        %v1884 = vshrl.u32 %v1883, 7
        %v1885 = vsub.s32 5, %v1884
        %v1886 = vrot.slane %v1267, %v1885
        %v1887 = vmul.f32 %v1869, %v1886
        %v1888 = vmul.f32 %v1873, %v1886
        %v1889 = vmul.f32 %v1877, %v1886
        %v1890 = vmul.f32 %v1881, %v1886
        %v1891 = vadd.f32 %v1863, %v1887
        %v1892 = vadd.f32 %v1864, %v1888
        %v1893 = vadd.f32 %v1865, %v1889
        %v1894 = vadd.f32 %v1866, %v1890
        %1895 = vset.pattern.permute.xlu0 22
        %1896 = vperm.xlu0 %1895, %v1270
        %v1897 = vpop.permute.xlu0 %1896
        %1899 = vset.pattern.permute.xlu0 22
        %1900 = vperm.xlu0 %1899, %v1271
        %v1901 = vpop.permute.xlu0 %1900
        %1903 = vset.pattern.permute.xlu0 22
        %1904 = vperm.xlu0 %1903, %v1272
        %v1905 = vpop.permute.xlu0 %1904
        %1907 = vset.pattern.permute.xlu0 22
        %1908 = vperm.xlu0 %1907, %v1273
        %v1909 = vpop.permute.xlu0 %1908
        %v1911 = vlaneseq
        %v1912 = vshrl.u32 %v1911, 7
        %v1913 = vsub.s32 6, %v1912
        %v1914 = vrot.slane %v1267, %v1913
        %v1915 = vmul.f32 %v1897, %v1914
        %v1916 = vmul.f32 %v1901, %v1914
        %v1917 = vmul.f32 %v1905, %v1914
        %v1918 = vmul.f32 %v1909, %v1914
        %v1919 = vadd.f32 %v1891, %v1915
        %v1920 = vadd.f32 %v1892, %v1916
        %v1921 = vadd.f32 %v1893, %v1917
        %v1922 = vadd.f32 %v1894, %v1918
        %1923 = vset.pattern.permute.xlu0 23
        %1924 = vperm.xlu0 %1923, %v1270
        %v1925 = vpop.permute.xlu0 %1924
        %1927 = vset.pattern.permute.xlu0 23
        %1928 = vperm.xlu0 %1927, %v1271
        %v1929 = vpop.permute.xlu0 %1928
        %1931 = vset.pattern.permute.xlu0 23
        %1932 = vperm.xlu0 %1931, %v1272
        %v1933 = vpop.permute.xlu0 %1932
        %1935 = vset.pattern.permute.xlu0 23
        %1936 = vperm.xlu0 %1935, %v1273
        %v1937 = vpop.permute.xlu0 %1936
        %v1939 = vlaneseq
        %v1940 = vshrl.u32 %v1939, 7
        %v1941 = vsub.s32 7, %v1940
        %v1942 = vrot.slane %v1267, %v1941
        %v1943 = vmul.f32 %v1925, %v1942
        %v1944 = vmul.f32 %v1929, %v1942
        %v1945 = vmul.f32 %v1933, %v1942
        %v1946 = vmul.f32 %v1937, %v1942
        %v1947 = vadd.f32 %v1919, %v1943
        %v1948 = vadd.f32 %v1920, %v1944
        %v1949 = vadd.f32 %v1921, %v1945
        %v1950 = vadd.f32 %v1922, %v1946
        %1951 = vset.pattern.permute.xlu0 24
        %1952 = vperm.xlu0 %1951, %v1270
        %v1953 = vpop.permute.xlu0 %1952
        %1955 = vset.pattern.permute.xlu0 24
        %1956 = vperm.xlu0 %1955, %v1271
        %v1957 = vpop.permute.xlu0 %1956
        %1959 = vset.pattern.permute.xlu0 24
        %1960 = vperm.xlu0 %1959, %v1272
        %v1961 = vpop.permute.xlu0 %1960
        %1963 = vset.pattern.permute.xlu0 24
        %1964 = vperm.xlu0 %1963, %v1273
        %v1965 = vpop.permute.xlu0 %1964
        %v1967 = vlaneseq
        %v1968 = vshrl.u32 %v1967, 7
        %v1969 = vsub.s32 0, %v1968
        %v1970 = vrot.slane %v1268, %v1969
        %v1971 = vmul.f32 %v1953, %v1970
        %v1972 = vmul.f32 %v1957, %v1970
        %v1973 = vmul.f32 %v1961, %v1970
        %v1974 = vmul.f32 %v1965, %v1970
        %v1975 = vadd.f32 %v1947, %v1971
        %v1976 = vadd.f32 %v1948, %v1972
        %v1977 = vadd.f32 %v1949, %v1973
        %v1978 = vadd.f32 %v1950, %v1974
        %1979 = vset.pattern.permute.xlu0 25
        %1980 = vperm.xlu0 %1979, %v1270
        %v1981 = vpop.permute.xlu0 %1980
        %1983 = vset.pattern.permute.xlu0 25
        %1984 = vperm.xlu0 %1983, %v1271
        %v1985 = vpop.permute.xlu0 %1984
        %1987 = vset.pattern.permute.xlu0 25
        %1988 = vperm.xlu0 %1987, %v1272
        %v1989 = vpop.permute.xlu0 %1988
        %1991 = vset.pattern.permute.xlu0 25
        %1992 = vperm.xlu0 %1991, %v1273
        %v1993 = vpop.permute.xlu0 %1992
        %v1995 = vlaneseq
        %v1996 = vshrl.u32 %v1995, 7
        %v1997 = vsub.s32 1, %v1996
        %v1998 = vrot.slane %v1268, %v1997
        %v1999 = vmul.f32 %v1981, %v1998
        %v2000 = vmul.f32 %v1985, %v1998
        %v2001 = vmul.f32 %v1989, %v1998
        %v2002 = vmul.f32 %v1993, %v1998
        %v2003 = vadd.f32 %v1975, %v1999
        %v2004 = vadd.f32 %v1976, %v2000
        %v2005 = vadd.f32 %v1977, %v2001
        %v2006 = vadd.f32 %v1978, %v2002
        %2007 = vset.pattern.permute.xlu0 26
        %2008 = vperm.xlu0 %2007, %v1270
        %v2009 = vpop.permute.xlu0 %2008
        %2011 = vset.pattern.permute.xlu0 26
        %2012 = vperm.xlu0 %2011, %v1271
        %v2013 = vpop.permute.xlu0 %2012
        %2015 = vset.pattern.permute.xlu0 26
        %2016 = vperm.xlu0 %2015, %v1272
        %v2017 = vpop.permute.xlu0 %2016
        %2019 = vset.pattern.permute.xlu0 26
        %2020 = vperm.xlu0 %2019, %v1273
        %v2021 = vpop.permute.xlu0 %2020
        %v2023 = vlaneseq
        %v2024 = vshrl.u32 %v2023, 7
        %v2025 = vsub.s32 2, %v2024
        %v2026 = vrot.slane %v1268, %v2025
        %v2027 = vmul.f32 %v2009, %v2026
        %v2028 = vmul.f32 %v2013, %v2026
        %v2029 = vmul.f32 %v2017, %v2026
        %v2030 = vmul.f32 %v2021, %v2026
        %v2031 = vadd.f32 %v2003, %v2027
        %v2032 = vadd.f32 %v2004, %v2028
        %v2033 = vadd.f32 %v2005, %v2029
        %v2034 = vadd.f32 %v2006, %v2030
        %2035 = vset.pattern.permute.xlu0 27
        %2036 = vperm.xlu0 %2035, %v1270
        %v2037 = vpop.permute.xlu0 %2036
        %2039 = vset.pattern.permute.xlu0 27
        %2040 = vperm.xlu0 %2039, %v1271
        %v2041 = vpop.permute.xlu0 %2040
        %2043 = vset.pattern.permute.xlu0 27
        %2044 = vperm.xlu0 %2043, %v1272
        %v2045 = vpop.permute.xlu0 %2044
        %2047 = vset.pattern.permute.xlu0 27
        %2048 = vperm.xlu0 %2047, %v1273
        %v2049 = vpop.permute.xlu0 %2048
        %v2051 = vlaneseq
        %v2052 = vshrl.u32 %v2051, 7
        %v2053 = vsub.s32 3, %v2052
        %v2054 = vrot.slane %v1268, %v2053
        %v2055 = vmul.f32 %v2037, %v2054
        %v2056 = vmul.f32 %v2041, %v2054
        %v2057 = vmul.f32 %v2045, %v2054
        %v2058 = vmul.f32 %v2049, %v2054
        %v2059 = vadd.f32 %v2031, %v2055
        %v2060 = vadd.f32 %v2032, %v2056
        %v2061 = vadd.f32 %v2033, %v2057
        %v2062 = vadd.f32 %v2034, %v2058
        %2063 = vset.pattern.permute.xlu0 28
        %2064 = vperm.xlu0 %2063, %v1270
        %v2065 = vpop.permute.xlu0 %2064
        %2067 = vset.pattern.permute.xlu0 28
        %2068 = vperm.xlu0 %2067, %v1271
        %v2069 = vpop.permute.xlu0 %2068
        %2071 = vset.pattern.permute.xlu0 28
        %2072 = vperm.xlu0 %2071, %v1272
        %v2073 = vpop.permute.xlu0 %2072
        %2075 = vset.pattern.permute.xlu0 28
        %2076 = vperm.xlu0 %2075, %v1273
        %v2077 = vpop.permute.xlu0 %2076
        %v2079 = vlaneseq
        %v2080 = vshrl.u32 %v2079, 7
        %v2081 = vsub.s32 4, %v2080
        %v2082 = vrot.slane %v1268, %v2081
        %v2083 = vmul.f32 %v2065, %v2082
        %v2084 = vmul.f32 %v2069, %v2082
        %v2085 = vmul.f32 %v2073, %v2082
        %v2086 = vmul.f32 %v2077, %v2082
        %v2087 = vadd.f32 %v2059, %v2083
        %v2088 = vadd.f32 %v2060, %v2084
        %v2089 = vadd.f32 %v2061, %v2085
        %v2090 = vadd.f32 %v2062, %v2086
        %2091 = vset.pattern.permute.xlu0 29
        %2092 = vperm.xlu0 %2091, %v1270
        %v2093 = vpop.permute.xlu0 %2092
        %2095 = vset.pattern.permute.xlu0 29
        %2096 = vperm.xlu0 %2095, %v1271
        %v2097 = vpop.permute.xlu0 %2096
        %2099 = vset.pattern.permute.xlu0 29
        %2100 = vperm.xlu0 %2099, %v1272
        %v2101 = vpop.permute.xlu0 %2100
        %2103 = vset.pattern.permute.xlu0 29
        %2104 = vperm.xlu0 %2103, %v1273
        %v2105 = vpop.permute.xlu0 %2104
        %v2107 = vlaneseq
        %v2108 = vshrl.u32 %v2107, 7
        %v2109 = vsub.s32 5, %v2108
        %v2110 = vrot.slane %v1268, %v2109
        %v2111 = vmul.f32 %v2093, %v2110
        %v2112 = vmul.f32 %v2097, %v2110
        %v2113 = vmul.f32 %v2101, %v2110
        %v2114 = vmul.f32 %v2105, %v2110
        %v2115 = vadd.f32 %v2087, %v2111
        %v2116 = vadd.f32 %v2088, %v2112
        %v2117 = vadd.f32 %v2089, %v2113
        %v2118 = vadd.f32 %v2090, %v2114
        %2119 = vset.pattern.permute.xlu0 30
        %2120 = vperm.xlu0 %2119, %v1270
        %v2121 = vpop.permute.xlu0 %2120
        %2123 = vset.pattern.permute.xlu0 30
        %2124 = vperm.xlu0 %2123, %v1271
        %v2125 = vpop.permute.xlu0 %2124
        %2127 = vset.pattern.permute.xlu0 30
        %2128 = vperm.xlu0 %2127, %v1272
        %v2129 = vpop.permute.xlu0 %2128
        %2131 = vset.pattern.permute.xlu0 30
        %2132 = vperm.xlu0 %2131, %v1273
        %v2133 = vpop.permute.xlu0 %2132
        %v2135 = vlaneseq
        %v2136 = vshrl.u32 %v2135, 7
        %v2137 = vsub.s32 6, %v2136
        %v2138 = vrot.slane %v1268, %v2137
        %v2139 = vmul.f32 %v2121, %v2138
        %v2140 = vmul.f32 %v2125, %v2138
        %v2141 = vmul.f32 %v2129, %v2138
        %v2142 = vmul.f32 %v2133, %v2138
        %v2143 = vadd.f32 %v2115, %v2139
        %v2144 = vadd.f32 %v2116, %v2140
        %v2145 = vadd.f32 %v2117, %v2141
        %v2146 = vadd.f32 %v2118, %v2142
        %2147 = vset.pattern.permute.xlu0 31
        %2148 = vperm.xlu0 %2147, %v1270
        %v2149 = vpop.permute.xlu0 %2148
        %2151 = vset.pattern.permute.xlu0 31
        %2152 = vperm.xlu0 %2151, %v1271
        %v2153 = vpop.permute.xlu0 %2152
        %2155 = vset.pattern.permute.xlu0 31
        %2156 = vperm.xlu0 %2155, %v1272
        %v2157 = vpop.permute.xlu0 %2156
        %2159 = vset.pattern.permute.xlu0 31
        %2160 = vperm.xlu0 %2159, %v1273
        %v2161 = vpop.permute.xlu0 %2160
        %v2163 = vlaneseq
        %v2164 = vshrl.u32 %v2163, 7
        %v2165 = vsub.s32 7, %v2164
        %v2166 = vrot.slane %v1268, %v2165
        %v2167 = vmul.f32 %v2149, %v2166
        %v2168 = vmul.f32 %v2153, %v2166
        %v2169 = vmul.f32 %v2157, %v2166
        %v2170 = vmul.f32 %v2161, %v2166
        %v2171 = vadd.f32 %v2143, %v2167
        %v2172 = vadd.f32 %v2144, %v2168
        %v2173 = vadd.f32 %v2145, %v2169
        %v2174 = vadd.f32 %v2146, %v2170
        %2176 = vset.pattern.permute.xlu0 0
        %2177 = vperm.xlu0 %2176, %v1275
        %v2178 = vpop.permute.xlu0 %2177
        %2181 = vset.pattern.permute.xlu0 0
        %2182 = vperm.xlu0 %2181, %v1276
        %v2183 = vpop.permute.xlu0 %2182
        %2186 = vset.pattern.permute.xlu0 0
        %2187 = vperm.xlu0 %2186, %v1277
        %v2188 = vpop.permute.xlu0 %2187
        %2191 = vset.pattern.permute.xlu0 0
        %2192 = vperm.xlu0 %2191, %v1278
        %v2193 = vpop.permute.xlu0 %2192
        %v2195 = vadd.f32 %v2171, %v2178
        %v2196 = vadd.f32 %v2172, %v2183
        %v2197 = vadd.f32 %v2173, %v2188
        %v2198 = vadd.f32 %v2174, %v2193
        %v2199 = vmax.f32 %v2195, 0.0
        %v2200 = vmax.f32 %v2196, 0.0
        %v2201 = vmax.f32 %v2197, 0.0
        %v2202 = vmax.f32 %v2198, 0.0
        %2204 = vset.pattern.permute.xlu0 0
        %2205 = vperm.xlu0 %2204, %v223
        %v2206 = vpop.permute.xlu0 %2205
        %2209 = vset.pattern.permute.xlu0 0
        %2210 = vperm.xlu0 %2209, %v224
        %v2211 = vpop.permute.xlu0 %2210
        %2214 = vset.pattern.permute.xlu0 0
        %2215 = vperm.xlu0 %2214, %v225
        %v2216 = vpop.permute.xlu0 %2215
        %2219 = vset.pattern.permute.xlu0 0
        %2220 = vperm.xlu0 %2219, %v226
        %v2221 = vpop.permute.xlu0 %2220
        %v2223 = vmul.f32 %v2199, %v2206
        %v2224 = vmul.f32 %v2200, %v2211
        %v2225 = vmul.f32 %v2201, %v2216
        %v2226 = vmul.f32 %v2202, %v2221
        %v2227 = vadd.f32 %v2223, %v2224
        %v2228 = vadd.f32 %v2227, %v2225
        %v2229 = vadd.f32 %v2228, %v2226
        %v2230 = vrot.slane %v2229, 4
        %v2231 = vadd.f32 %v2229, %v2230
        %v2232 = vrot.slane %v2231, 2
        %v2233 = vadd.f32 %v2231, %v2232
        %v2234 = vrot.slane %v2233, 1
        %v2235 = vadd.f32 %v2233, %v2234
        %2237 = vset.pattern.permute.xlu0 0
        %2238 = vperm.xlu0 %2237, %v227
        %v2239 = vpop.permute.xlu0 %2238
        %v2241 = vadd.f32 %v2235, %v2239
        %vm2242 = vcmp.gt.f32.partialorder %v2241, 20.0
        %v2243 = vmin.f32 %v2241, 20.0
        %v2244 = vmul.f32 %v2243, 1.442695
        %v2245 = vpow.pop %v2244
        %v2246 = vadd.f32 %v2245, 1.0
        %v2247 = vlog2.pop %v2246
        %v2248 = vmul.f32 %v2247, 0.6931472
        %v2249 = vmul.f32 -0.5, %v2245
        %v2250 = vadd.f32 %v2249, 1.0
        %v2251 = vmul.f32 %v2250, %v2245
        %v2252 = vand.u32 2147483647, %v2245
        %vm2253 = vcmp.lt.f32.partialorder %v2252, 0.0004427343
        %v2254 = vsel %vm2253, %v2251, %v2248
        %v2255 = vsel %vm2242, %v2241, %v2254
        %2256 = vst [vmem:[%s214] sm:$0x1] %v2255
        %s2257 = sand.u32 %s137, 1
        %s2258 = scalar_lea.sflag [#allocation3], %s2257
        %s2259 = sand.u32 %s137, 1
        %s2260 = scalar_lea.vmem [#allocation2], %s2259
        // Predicated region
        $region41: #{tpu_custom_call.1} parent=39 // pred_check
          %p2261 = pneg %p147
        $region42: #{tpu_custom_call.1} parent=39 // pred_check_branch
          %2263 = sbr.rel (%p2261) target = $region44
        $region43: #{tpu_custom_call.1} parent=39 // pred_region
          %s2265 = ssub.s32 16, 16
          %2266 = vsyncadd %s2258, %s2265
          %s2267 = smul.addr %s19, 16
          %s2268 = scalar_lea.hbm %s5, %s2267
          %s2270 = sshll.u32 %s2260, 4
          %s2271 = int_to_ptr.vmem [resolvable:$true] %s2270
          %2273 = dma.vmem_to_hbm [thread:$0]  %s2271, 16, %s2268, %s2258
        $region44: #{tpu_custom_call.1} parent=39 // pred_fallthru
          _
      $region40: #{tpu_custom_call.1} parent=5 // pred_fallthru
        _
      %p2274 = scmp.le.s32.totalorder 2, %s14
      // Predicated region
      $region45: #{tpu_custom_call.1} parent=5 // pred_check
        %p2275 = pneg %p2274
      $region46: #{tpu_custom_call.1} parent=5 // pred_check_branch
        %2277 = sbr.rel (%p2275) target = $region48
      $region47: #{tpu_custom_call.1} parent=5 // pred_region
        %s2278 = ssub.s32 %s14, 2
        // Predicated region
        $region49: #{tpu_custom_call.1} parent=47 // pred_check
          %p2279 = pneg %p153
        $region50: #{tpu_custom_call.1} parent=47 // pred_check_branch
          %2281 = sbr.rel (%p2279) target = $region52
        $region51: #{tpu_custom_call.1} parent=47 // pred_region
          %s2282 = sand.u32 %s138, 1
          %s2283 = scalar_lea.sflag [#allocation3], %s2282
          %s2284 = sand.u32 %s138, 1
          %s2285 = scalar_lea.vmem [#allocation2], %s2284
          %2286 = dma.done %s2283, 16
        $region52: #{tpu_custom_call.1} parent=47 // pred_fallthru
          _
      $region48: #{tpu_custom_call.1} parent=5 // pred_fallthru
        _
    $region6: #{tpu_custom_call.1} parent=1 // loop_footer
      %s18 = sadd.s32 1, %s14
    $region7: #{tpu_custom_call.1} parent=1 // loop_footer_branch
      %13 = sbr.rel target = $region3
    $region8: #{tpu_custom_call.1} parent=1 // loop_exit
      _
    %2287 = vsyncpa [#allocation3], 1
    %s2288 = scalar_lea.sflag [#allocation3], 1
    %2289 = vsyncpa %s2288, 1

</llo_original>
